<compile_context>
chip_gen: v6e
topology: v6e:2x2x1
jax: 0.10.0
libtpu: 0.0.40
codegen_flags: <defaults>
</compile_context>

<pallas_src>
import functools

import jax
import jax.numpy as jnp
from jax.experimental import pallas as pl
from jax.experimental.pallas import tpu as pltpu

NEG_SLOPE = 0.05


def _round_up(x, m):
    return ((x + m - 1) // m) * m


def _lrelu(v):
    return jnp.where(v > 0, v, NEG_SLOPE * v)


def _vae_classifier_kernel(
    x_ref,      # (TB, Din)      f32  streamed input tile
    eps_ref,    # (TB, Lp)       f32  streamed noise tile (zero-padded lanes)
    ew1_ref,    # (Din, Hep)     bf16 resident encoder weight
    wml_ref,    # (Hep, 2*Lp)    bf16 resident fused [mean | logvar] weight
    w1_ref,     # (Lp, Hdp)      bf16 resident fc1 weight
    w2_ref,     # (Hdp, H4p)     bf16 resident fc2 weight
    w3_ref,     # (H4p, Hd3p)    bf16 resident fc3 weight
    bias_ref,   # (1, WB)        f32  resident biases (128-aligned slots)
    out_ref,    # (1, 1, TB)     f32  lane-dense output row for this tile
    *,
    lp,
    offs,
):
    f32, bf16 = jnp.float32, jnp.bfloat16
    o_eb1, o_bml, o_b1, o_b2, o_b3, o_w4 = offs
    hep = ew1_ref.shape[1]
    hdp = w1_ref.shape[1]
    h4p = w2_ref.shape[1]
    hd3p = w3_ref.shape[1]

    # ---- synthetic VAE encoder: Linear -> LeakyReLU -> fused (mean|logvar) ----
    # bf16 MXU operands, f32 accumulation + f32 VPU/EUP math (v5e-safe).
    h = jnp.dot(x_ref[...].astype(bf16), ew1_ref[...], preferred_element_type=f32)
    h = _lrelu(h + bias_ref[:, o_eb1:o_eb1 + hep])

    ml = jnp.dot(h.astype(bf16), wml_ref[...], preferred_element_type=f32)
    ml = ml + bias_ref[:, o_bml:o_bml + 2 * lp]
    mean = ml[:, :lp]          # 128-aligned lane slot
    logvar = ml[:, lp:]        # 128-aligned lane slot

    # Reparameterization: z = mean + exp(0.5 * logvar) * eps.
    # Padded lanes: mean=0, logvar=0 -> exp=1, eps=0 -> z=0.
    z = mean + jnp.exp(0.5 * logvar) * eps_ref[...]

    # ---- classifier head (Dropout() == identity in eval mode) ----
    z = _lrelu(jnp.dot(z.astype(bf16), w1_ref[...], preferred_element_type=f32)
               + bias_ref[:, o_b1:o_b1 + hdp])
    z = _lrelu(jnp.dot(z.astype(bf16), w2_ref[...], preferred_element_type=f32)
               + bias_ref[:, o_b2:o_b2 + h4p])
    z = _lrelu(jnp.dot(z.astype(bf16), w3_ref[...], preferred_element_type=f32)
               + bias_ref[:, o_b3:o_b3 + hd3p])
    # Note: b3's spare lane is 1.0, so the matching lane of z is lrelu(1)=1 and
    # the fc4 bias (stored in the same lane of the fc4 row) is added for free.

    # fc4: VPU multiply + lane reduce (no N=1 MXU round trip).
    w4row = bias_ref[:, o_w4:o_w4 + hd3p]
    logit = jnp.sum(z * w4row, axis=-1, keepdims=True)       # (TB, 1), incl. b4
    sig = jax.nn.sigmoid(logit)

    # Lane-dense writeback: sublane->lane transpose of the (TB, 1) column via a
    # masked sublane reduction (simple VPU select + XLU reduce, no relayout).
    tb = sig.shape[0]
    sub = jax.lax.broadcasted_iota(jnp.int32, (tb, tb), 0)
    lane = jax.lax.broadcasted_iota(jnp.int32, (tb, tb), 1)
    row = jnp.sum(jnp.where(sub == lane, sig, 0.0), axis=0, keepdims=True)  # (1, TB)
    out_ref[...] = row.reshape(out_ref.shape)


def _pack_params(params):
    """Zero-pad every lane dim to a multiple of 128 and pack biases into one
    row of 128-aligned slots.  MXU weights are stored bf16, biases f32."""
    f32, bf16 = jnp.float32, jnp.bfloat16
    Din, He = params["enc_w1"].shape
    L = params["w_mean"].shape[1]
    Hd = params["fc1_w"].shape[1]
    H4 = params["fc2_w"].shape[1]

    Hep = _round_up(He, 128)
    Lp = _round_up(L, 128)
    Hdp = _round_up(Hd, 128)
    H4p = _round_up(H4, 128)
    Hd3p = _round_up(Hd + 1, 128)     # +1 spare lane carries the fc4 bias

    def pad2(w, r, c):
        return jnp.pad(w, ((0, r - w.shape[0]), (0, c - w.shape[1])))

    def padrow(b, c):
        return jnp.pad(b, ((0, 0), (0, c - b.shape[1])))

    ew1 = pad2(params["enc_w1"], Din, Hep).astype(bf16)

    wml = jnp.concatenate(
        [pad2(params["w_mean"], He, Lp), pad2(params["w_logvar"], He, Lp)], axis=1)
    wml = pad2(wml, Hep, 2 * Lp).astype(bf16)

    w1 = pad2(params["fc1_w"], Lp, Hdp).astype(bf16)
    w2 = pad2(params["fc2_w"], Hdp, H4p).astype(bf16)
    w3 = pad2(params["fc3_w"], H4p, Hd3p).astype(bf16)

    b3 = padrow(params["fc3_b"], Hd3p).at[0, Hd].set(1.0)                 # spare lane = 1
    w4 = padrow(params["fc4_w"].T, Hd3p).at[0, Hd].set(params["fc4_b"][0, 0])  # carries b4

    segs = [
        padrow(params["enc_b1"], Hep),
        padrow(params["b_mean"], Lp),
        padrow(params["b_logvar"], Lp),
        padrow(params["fc1_b"], Hdp),
        padrow(params["fc2_b"], H4p),
        b3,
        w4,
    ]
    bias_pack = jnp.concatenate(segs, axis=1).astype(f32)

    offs, cur = [], 0
    for width in (Hep, 2 * Lp, Hdp, H4p, Hd3p, Hd3p):
        offs.append(cur)
        cur += width

    return ew1, wml, w1, w2, w3, bias_pack, tuple(offs), Lp


def _pick_batch_tiles(batch, din):
    """Batch tile: multiple of 8, <=512, double-buffered x tile <=~24 MiB,
    and >=2 grid steps when B >= 16 (v7x has 2 TensorCores)."""
    cap = ((24 * (1 << 20)) // (2 * din * 4)) // 8 * 8
    cap = max(8, min(512, cap))
    ntiles = max(1, -(-batch // cap))
    if ntiles == 1 and batch >= 16:
        ntiles = 2
    tb = _round_up(-(-batch // ntiles), 8)
    return tb, ntiles


@functools.partial(jax.jit, static_argnames=("single_buffer_weights",))
def binary_classifier_vae_forward(x, params, eps, single_buffer_weights=True):
    """x: (B, C, H, W) float32; eps: (B, latentDim). Returns sigmoid probs (B, 1)."""
    B = x.shape[0]
    Din = params["enc_w1"].shape[0]
    L = params["w_mean"].shape[1]

    ew1, wml, w1, w2, w3, bias_pack, offs, Lp = _pack_params(params)

    x_flat = x.reshape(B, -1).astype(jnp.float32)
    eps_p = jnp.pad(eps.astype(jnp.float32), ((0, 0), (0, Lp - L)))

    TB, ntiles = _pick_batch_tiles(B, Din)
    B_pad = TB * ntiles
    if B_pad != B:
        x_flat = jnp.pad(x_flat, ((0, B_pad - B), (0, 0)))
        eps_p = jnp.pad(eps_p, ((0, B_pad - B), (0, 0)))

    kernel = functools.partial(_vae_classifier_kernel, lp=Lp, offs=offs)

    def resident_spec(shape):
        if single_buffer_weights:
            # Constant block index -> never re-DMA'd; single VMEM buffer.
            return pl.BlockSpec(shape, lambda i: (0, 0), pipeline_mode=pl.Buffered(1))
        return pl.BlockSpec(shape, lambda i: (0, 0))

    # Explicit scoped-VMEM budget (defaults: 16 MiB v5e / 32 MiB v6e, v7x).
    resident_bytes = 2 * (ew1.size + wml.size + w1.size + w2.size + w3.size) \
        + 4 * bias_pack.size
    streamed_bytes = 2 * TB * 4 * (Din + Lp) + 2 * TB * 4
    vmem_limit = int(min(64 * (1 << 20),
                         max(32 * (1 << 20), 2 * (resident_bytes + streamed_bytes))))

    out = pl.pallas_call(
        kernel,
        out_shape=jax.ShapeDtypeStruct((ntiles, 1, TB), jnp.float32),
        grid=(ntiles,),
        in_specs=[
            pl.BlockSpec((TB, Din), lambda i: (i, 0)),   # x tile streams
            pl.BlockSpec((TB, Lp), lambda i: (i, 0)),    # eps tile streams
            resident_spec(ew1.shape),                    # encoder weight (resident)
            resident_spec(wml.shape),                    # fused mean|logvar weight
            resident_spec(w1.shape),
            resident_spec(w2.shape),
            resident_spec(w3.shape),
            resident_spec(bias_pack.shape),              # packed biases + fc4 row
        ],
        out_specs=pl.BlockSpec((1, 1, TB), lambda i: (i, 0, 0)),
        compiler_params=pltpu.CompilerParams(
            dimension_semantics=("parallel",),
            vmem_limit_bytes=vmem_limit,
        ),
    )(x_flat, eps_p, ew1, wml, w1, w2, w3, bias_pack)

    return out.reshape(-1)[:B].reshape(B, 1)


def _reference_forward(x, params, eps):
    """Pure-JAX f32 reference of the same forward pass."""
    B = x.shape[0]
    xf = x.reshape(B, -1).astype(jnp.float32)
    h = _lrelu(xf @ params["enc_w1"] + params["enc_b1"])
    mean = h @ params["w_mean"] + params["b_mean"]
    logvar = h @ params["w_logvar"] + params["b_logvar"]
    z = mean + jnp.exp(0.5 * logvar) * eps
    z = _lrelu(z @ params["fc1_w"] + params["fc1_b"])
    z = _lrelu(z @ params["fc2_w"] + params["fc2_b"])
    z = _lrelu(z @ params["fc3_w"] + params["fc3_b"])
    z = z @ params["fc4_w"] + params["fc4_b"]
    return jax.nn.sigmoid(z)


def init_params(key, in_features, enc_hidden, latent_dim, hidden_size):
    """Deterministic synthetic parameter init; weights stored (in, out)."""
    ks = jax.random.split(key, 16)

    def lin(kw, kb, n_in, n_out, scale):
        w = scale * jax.random.normal(kw, (n_in, n_out), dtype=jnp.float32)
        b = scale * jax.random.normal(kb, (1, n_out), dtype=jnp.float32)
        return w, b

    p = {}
    p["enc_w1"], p["enc_b1"] = lin(ks[0], ks[1], in_features, enc_hidden, 0.02)
    p["w_mean"], p["b_mean"] = lin(ks[2], ks[3], enc_hidden, latent_dim, 0.1)
    p["w_logvar"], p["b_logvar"] = lin(ks[4], ks[5], enc_hidden, latent_dim, 0.1)
    p["fc1_w"], p["fc1_b"] = lin(ks[6], ks[7], latent_dim, hidden_size, 0.1)
    p["fc2_w"], p["fc2_b"] = lin(ks[8], ks[9], hidden_size, 4 * hidden_size, 0.1)
    p["fc3_w"], p["fc3_b"] = lin(ks[10], ks[11], 4 * hidden_size, hidden_size, 0.1)
    p["fc4_w"], p["fc4_b"] = lin(ks[12], ks[13], hidden_size, 1, 0.1)
    return p


if __name__ == "__main__":
    # Small shapes: batch=2, channels=4, spatial=16x16, latentDim=32, hidden=32.
    B, C, H, W = 2, 4, 16, 16
    IN_FEATURES = C * H * W
    ENC_HIDDEN = 64
    LATENT_DIM = 32
    HIDDEN_SIZE = 32

    root = jax.random.PRNGKey(0)
    k_x, k_eps, k_p = jax.random.split(root, 3)

    x = jax.random.normal(k_x, (B, C, H, W), dtype=jnp.float32)
    eps = jax.random.normal(k_eps, (B, LATENT_DIM), dtype=jnp.float32)
    params = init_params(k_p, IN_FEATURES, ENC_HIDDEN, LATENT_DIM, HIDDEN_SIZE)

    try:
        out = binary_classifier_vae_forward(x, params, eps, single_buffer_weights=True)
        out = jax.block_until_ready(out)
    except Exception:
        # Fallback for JAX builds without BlockSpec(pipeline_mode=pl.Buffered(...)).
        out = binary_classifier_vae_forward(x, params, eps, single_buffer_weights=False)
        out = jax.block_until_ready(out)

    assert out.shape == (B, 1)
    assert bool(jnp.all(jnp.isfinite(out)))
    assert bool(jnp.all((out >= 0.0) & (out <= 1.0)))

    # bf16 MXU operands vs. the f32 reference -> slightly relaxed tolerance.
    ref = _reference_forward(x, params, eps)
    assert bool(jnp.allclose(out, ref, atol=2e-2, rtol=2e-2)), (
        f"max abs diff {float(jnp.max(jnp.abs(out - ref)))}"
    )

    print("KERNEL_OK")
</pallas_src>

<mosaic_0001>
module attributes {stable_mosaic.version = 11 : i64} {
  func.func @_vae_classifier_kernel(%arg0: i32, %arg1: memref<8x1024xf32, #tpu.memory_space<vmem>>, %arg2: memref<8x128xf32, #tpu.memory_space<vmem>>, %arg3: memref<1024x128xbf16, #tpu.memory_space<vmem>>, %arg4: memref<128x256xbf16, #tpu.memory_space<vmem>>, %arg5: memref<128x128xbf16, #tpu.memory_space<vmem>>, %arg6: memref<128x128xbf16, #tpu.memory_space<vmem>>, %arg7: memref<128x128xbf16, #tpu.memory_space<vmem>>, %arg8: memref<1x896xf32, #tpu.memory_space<vmem>>, %arg9: memref<1x1x8xf32, #tpu.memory_space<vmem>>) attributes {dimension_semantics = [#tpu.dimension_semantics<parallel>], iteration_bounds = array<i64: 1>, scalar_prefetch = 0 : i64, scratch_operands = 0 : i64, tpu.core_type = #tpu.core_type<tc>, window_params = [{transform_indices = @transform_0, window_bounds = array<i64: 8, 1024>}, {transform_indices = @transform_1, window_bounds = array<i64: 8, 128>}, {pipeline_mode = #tpu.pipeline_mode<synchronous>, transform_indices = @transform_2, window_bounds = array<i64: 1024, 128>}, {pipeline_mode = #tpu.pipeline_mode<synchronous>, transform_indices = @transform_3, window_bounds = array<i64: 128, 256>}, {pipeline_mode = #tpu.pipeline_mode<synchronous>, transform_indices = @transform_4, window_bounds = array<i64: 128, 128>}, {pipeline_mode = #tpu.pipeline_mode<synchronous>, transform_indices = @transform_5, window_bounds = array<i64: 128, 128>}, {pipeline_mode = #tpu.pipeline_mode<synchronous>, transform_indices = @transform_6, window_bounds = array<i64: 128, 128>}, {pipeline_mode = #tpu.pipeline_mode<synchronous>, transform_indices = @transform_7, window_bounds = array<i64: 1, 896>}, {transform_indices = @transform_8, window_bounds = array<i64: 1, 1, 8>}]} {
    %c0 = arith.constant 0 : index
    %c0_0 = arith.constant 0 : index
    %0 = vector.load %arg1[%c0, %c0_0] : memref<8x1024xf32, #tpu.memory_space<vmem>>, vector<8x1024xf32>
    %1 = arith.truncf %0 : vector<8x1024xf32> to vector<8x1024xbf16>
    %c0_1 = arith.constant 0 : index
    %c0_2 = arith.constant 0 : index
    %2 = vector.load %arg3[%c0_1, %c0_2] : memref<1024x128xbf16, #tpu.memory_space<vmem>>, vector<1024x128xbf16>
    %cst = arith.constant dense<0.000000e+00> : vector<8x128xf32>
    %3 = tpu.matmul %1, %2, %cst {dimension_numbers = #tpu.dot_dimension_numbers<[1], [0], [0], [1], [0, 0, 1, 1], [], []>} : vector<8x1024xbf16>, vector<1024x128xbf16>, vector<8x128xf32> -> vector<8x128xf32>
    %c0_3 = arith.constant 0 : index
    %c0_4 = arith.constant 0 : index
    %4 = vector.load %arg8[%c0_3, %c0_4] : memref<1x896xf32, #tpu.memory_space<vmem>>, vector<1x128xf32>
    %5 = vector.broadcast %4 : vector<1x128xf32> to vector<8x128xf32>
    %6 = arith.addf %3, %5 : vector<8x128xf32>
    %cst_5 = arith.constant 0.000000e+00 : f32
    %7 = vector.broadcast %cst_5 : f32 to vector<8x128xf32>
    %8 = arith.cmpf ogt, %6, %7 : vector<8x128xf32>
    %cst_6 = arith.constant 5.000000e-02 : f32
    %9 = vector.broadcast %cst_6 : f32 to vector<8x128xf32>
    %10 = arith.mulf %9, %6 : vector<8x128xf32>
    %11 = arith.select %8, %6, %10 : vector<8x128xi1>, vector<8x128xf32>
    %12 = arith.truncf %11 : vector<8x128xf32> to vector<8x128xbf16>
    %c0_7 = arith.constant 0 : index
    %c0_8 = arith.constant 0 : index
    %13 = vector.load %arg4[%c0_7, %c0_8] : memref<128x256xbf16, #tpu.memory_space<vmem>>, vector<128x256xbf16>
    %cst_9 = arith.constant dense<0.000000e+00> : vector<8x256xf32>
    %14 = tpu.matmul %12, %13, %cst_9 {dimension_numbers = #tpu.dot_dimension_numbers<[1], [0], [0], [1], [0, 0, 1, 1], [], []>} : vector<8x128xbf16>, vector<128x256xbf16>, vector<8x256xf32> -> vector<8x256xf32>
    %c0_10 = arith.constant 0 : index
    %c128 = arith.constant 128 : index
    %15 = vector.load %arg8[%c0_10, %c128] : memref<1x896xf32, #tpu.memory_space<vmem>>, vector<1x256xf32>
    %16 = vector.broadcast %15 : vector<1x256xf32> to vector<8x256xf32>
    %17 = arith.addf %14, %16 : vector<8x256xf32>
    %18 = vector.extract_strided_slice %17 {offsets = [0, 0], sizes = [8, 128], strides = [1, 1]} : vector<8x256xf32> to vector<8x128xf32>
    %19 = vector.extract_strided_slice %17 {offsets = [0, 128], sizes = [8, 128], strides = [1, 1]} : vector<8x256xf32> to vector<8x128xf32>
    %cst_11 = arith.constant 5.000000e-01 : f32
    %20 = vector.broadcast %cst_11 : f32 to vector<8x128xf32>
    %21 = arith.mulf %20, %19 : vector<8x128xf32>
    %22 = math.exp %21 : vector<8x128xf32>
    %c0_12 = arith.constant 0 : index
    %c0_13 = arith.constant 0 : index
    %23 = vector.load %arg2[%c0_12, %c0_13] : memref<8x128xf32, #tpu.memory_space<vmem>>, vector<8x128xf32>
    %24 = arith.mulf %22, %23 : vector<8x128xf32>
    %25 = arith.addf %18, %24 : vector<8x128xf32>
    %26 = arith.truncf %25 : vector<8x128xf32> to vector<8x128xbf16>
    %c0_14 = arith.constant 0 : index
    %c0_15 = arith.constant 0 : index
    %27 = vector.load %arg5[%c0_14, %c0_15] : memref<128x128xbf16, #tpu.memory_space<vmem>>, vector<128x128xbf16>
    %cst_16 = arith.constant dense<0.000000e+00> : vector<8x128xf32>
    %28 = tpu.matmul %26, %27, %cst_16 {dimension_numbers = #tpu.dot_dimension_numbers<[1], [0], [0], [1], [0, 0, 1, 1], [], []>} : vector<8x128xbf16>, vector<128x128xbf16>, vector<8x128xf32> -> vector<8x128xf32>
    %c0_17 = arith.constant 0 : index
    %c384 = arith.constant 384 : index
    %29 = vector.load %arg8[%c0_17, %c384] : memref<1x896xf32, #tpu.memory_space<vmem>>, vector<1x128xf32>
    %30 = vector.broadcast %29 : vector<1x128xf32> to vector<8x128xf32>
    %31 = arith.addf %28, %30 : vector<8x128xf32>
    %cst_18 = arith.constant 0.000000e+00 : f32
    %32 = vector.broadcast %cst_18 : f32 to vector<8x128xf32>
    %33 = arith.cmpf ogt, %31, %32 : vector<8x128xf32>
    %cst_19 = arith.constant 5.000000e-02 : f32
    %34 = vector.broadcast %cst_19 : f32 to vector<8x128xf32>
    %35 = arith.mulf %34, %31 : vector<8x128xf32>
    %36 = arith.select %33, %31, %35 : vector<8x128xi1>, vector<8x128xf32>
    %37 = arith.truncf %36 : vector<8x128xf32> to vector<8x128xbf16>
    %c0_20 = arith.constant 0 : index
    %c0_21 = arith.constant 0 : index
    %38 = vector.load %arg6[%c0_20, %c0_21] : memref<128x128xbf16, #tpu.memory_space<vmem>>, vector<128x128xbf16>
    %cst_22 = arith.constant dense<0.000000e+00> : vector<8x128xf32>
    %39 = tpu.matmul %37, %38, %cst_22 {dimension_numbers = #tpu.dot_dimension_numbers<[1], [0], [0], [1], [0, 0, 1, 1], [], []>} : vector<8x128xbf16>, vector<128x128xbf16>, vector<8x128xf32> -> vector<8x128xf32>
    %c0_23 = arith.constant 0 : index
    %c512 = arith.constant 512 : index
    %40 = vector.load %arg8[%c0_23, %c512] : memref<1x896xf32, #tpu.memory_space<vmem>>, vector<1x128xf32>
    %41 = vector.broadcast %40 : vector<1x128xf32> to vector<8x128xf32>
    %42 = arith.addf %39, %41 : vector<8x128xf32>
    %cst_24 = arith.constant 0.000000e+00 : f32
    %43 = vector.broadcast %cst_24 : f32 to vector<8x128xf32>
    %44 = arith.cmpf ogt, %42, %43 : vector<8x128xf32>
    %cst_25 = arith.constant 5.000000e-02 : f32
    %45 = vector.broadcast %cst_25 : f32 to vector<8x128xf32>
    %46 = arith.mulf %45, %42 : vector<8x128xf32>
    %47 = arith.select %44, %42, %46 : vector<8x128xi1>, vector<8x128xf32>
    %48 = arith.truncf %47 : vector<8x128xf32> to vector<8x128xbf16>
    %c0_26 = arith.constant 0 : index
    %c0_27 = arith.constant 0 : index
    %49 = vector.load %arg7[%c0_26, %c0_27] : memref<128x128xbf16, #tpu.memory_space<vmem>>, vector<128x128xbf16>
    %cst_28 = arith.constant dense<0.000000e+00> : vector<8x128xf32>
    %50 = tpu.matmul %48, %49, %cst_28 {dimension_numbers = #tpu.dot_dimension_numbers<[1], [0], [0], [1], [0, 0, 1, 1], [], []>} : vector<8x128xbf16>, vector<128x128xbf16>, vector<8x128xf32> -> vector<8x128xf32>
    %c0_29 = arith.constant 0 : index
    %c640 = arith.constant 640 : index
    %51 = vector.load %arg8[%c0_29, %c640] : memref<1x896xf32, #tpu.memory_space<vmem>>, vector<1x128xf32>
    %52 = vector.broadcast %51 : vector<1x128xf32> to vector<8x128xf32>
    %53 = arith.addf %50, %52 : vector<8x128xf32>
    %cst_30 = arith.constant 0.000000e+00 : f32
    %54 = vector.broadcast %cst_30 : f32 to vector<8x128xf32>
    %55 = arith.cmpf ogt, %53, %54 : vector<8x128xf32>
    %cst_31 = arith.constant 5.000000e-02 : f32
    %56 = vector.broadcast %cst_31 : f32 to vector<8x128xf32>
    %57 = arith.mulf %56, %53 : vector<8x128xf32>
    %58 = arith.select %55, %53, %57 : vector<8x128xi1>, vector<8x128xf32>
    %c0_32 = arith.constant 0 : index
    %c768 = arith.constant 768 : index
    %59 = vector.load %arg8[%c0_32, %c768] : memref<1x896xf32, #tpu.memory_space<vmem>>, vector<1x128xf32>
    %60 = vector.broadcast %59 : vector<1x128xf32> to vector<8x128xf32>
    %61 = arith.mulf %58, %60 : vector<8x128xf32>
    %cst_33 = arith.constant dense<0.000000e+00> : vector<8xf32>
    %62 = vector.multi_reduction <add>, %61, %cst_33 [1] : vector<8x128xf32> to vector<8xf32>
    %63 = vector.shape_cast %62 : vector<8xf32> to vector<8x1xf32>
    %64 = arith.negf %63 : vector<8x1xf32>
    %65 = math.exp %64 : vector<8x1xf32>
    %cst_34 = arith.constant 1.000000e+00 : f32
    %66 = vector.broadcast %cst_34 : f32 to vector<8x1xf32>
    %67 = arith.addf %66, %65 : vector<8x1xf32>
    %68 = arith.divf %66, %67 : vector<8x1xf32>
    %69 = tpu.iota {dimensions = array<i32: 0>} : vector<8x8xi32>
    %70 = tpu.iota {dimensions = array<i32: 1>} : vector<8x8xi32>
    %71 = arith.cmpi eq, %69, %70 : vector<8x8xi32>
    %cst_35 = arith.constant 0.000000e+00 : f32
    %72 = vector.shape_cast %68 : vector<8x1xf32> to vector<8x1xf32>
    %73 = vector.broadcast %72 : vector<8x1xf32> to vector<8x8xf32>
    %74 = vector.broadcast %cst_35 : f32 to vector<8x8xf32>
    %75 = arith.select %71, %73, %74 : vector<8x8xi1>, vector<8x8xf32>
    %cst_36 = arith.constant dense<0.000000e+00> : vector<8xf32>
    %76 = vector.multi_reduction <add>, %75, %cst_36 [0] : vector<8x8xf32> to vector<8xf32>
    %77 = vector.shape_cast %76 : vector<8xf32> to vector<1x8xf32>
    %78 = vector.shape_cast %77 : vector<1x8xf32> to vector<1x1x8xf32>
    %c0_37 = arith.constant 0 : index
    %c0_38 = arith.constant 0 : index
    %c0_39 = arith.constant 0 : index
    %79 = vector.load %arg9[%c0_37, %c0_38, %c0_39] : memref<1x1x8xf32, #tpu.memory_space<vmem>>, vector<1x1x8xf32>
    tpu.vector_store %arg9[%c0_37, %c0_38, %c0_39], %78 {strides = array<i32>} : memref<1x1x8xf32, #tpu.memory_space<vmem>>, vector<1x1x8xf32>,
    return
  }
  func.func @transform_0(%arg0: i32) -> (i32, i32) {
    %c0_i32 = arith.constant 0 : i32
    %c0_i32_0 = arith.constant 0 : i32
    return %arg0, %c0_i32 : i32, i32
  }
  func.func @transform_1(%arg0: i32) -> (i32, i32) {
    %c0_i32 = arith.constant 0 : i32
    %c0_i32_0 = arith.constant 0 : i32
    return %arg0, %c0_i32 : i32, i32
  }
  func.func @transform_2(%arg0: i32) -> (i32, i32) {
    %c0_i32 = arith.constant 0 : i32
    %c0_i32_0 = arith.constant 0 : i32
    %c0_i32_1 = arith.constant 0 : i32
    return %c0_i32, %c0_i32_0 : i32, i32
  }
  func.func @transform_3(%arg0: i32) -> (i32, i32) {
    %c0_i32 = arith.constant 0 : i32
    %c0_i32_0 = arith.constant 0 : i32
    %c0_i32_1 = arith.constant 0 : i32
    return %c0_i32, %c0_i32_0 : i32, i32
  }
  func.func @transform_4(%arg0: i32) -> (i32, i32) {
    %c0_i32 = arith.constant 0 : i32
    %c0_i32_0 = arith.constant 0 : i32
    %c0_i32_1 = arith.constant 0 : i32
    return %c0_i32, %c0_i32_0 : i32, i32
  }
  func.func @transform_5(%arg0: i32) -> (i32, i32) {
    %c0_i32 = arith.constant 0 : i32
    %c0_i32_0 = arith.constant 0 : i32
    %c0_i32_1 = arith.constant 0 : i32
    return %c0_i32, %c0_i32_0 : i32, i32
  }
  func.func @transform_6(%arg0: i32) -> (i32, i32) {
    %c0_i32 = arith.constant 0 : i32
    %c0_i32_0 = arith.constant 0 : i32
    %c0_i32_1 = arith.constant 0 : i32
    return %c0_i32, %c0_i32_0 : i32, i32
  }
  func.func @transform_7(%arg0: i32) -> (i32, i32) {
    %c0_i32 = arith.constant 0 : i32
    %c0_i32_0 = arith.constant 0 : i32
    %c0_i32_1 = arith.constant 0 : i32
    return %c0_i32, %c0_i32_0 : i32, i32
  }
  func.func @transform_8(%arg0: i32) -> (i32, i32, i32) {
    %c0_i32 = arith.constant 0 : i32
    %c0_i32_0 = arith.constant 0 : i32
    %c0_i32_1 = arith.constant 0 : i32
    return %arg0, %c0_i32, %c0_i32_0 : i32, i32, i32
  }
}

module attributes {stable_mosaic.version = 11 : i64} {
  func.func @_vae_classifier_kernel(%arg0: i32, %arg1: memref<8x1024xf32, #tpu.memory_space<vmem>>, %arg2: memref<8x128xf32, #tpu.memory_space<vmem>>, %arg3: memref<1024x128xbf16, #tpu.memory_space<vmem>>, %arg4: memref<128x256xbf16, #tpu.memory_space<vmem>>, %arg5: memref<128x128xbf16, #tpu.memory_space<vmem>>, %arg6: memref<128x128xbf16, #tpu.memory_space<vmem>>, %arg7: memref<128x128xbf16, #tpu.memory_space<vmem>>, %arg8: memref<1x896xf32, #tpu.memory_space<vmem>>, %arg9: memref<1x1x8xf32, #tpu.memory_space<vmem>>) attributes {dimension_semantics = [#tpu.dimension_semantics<parallel>], iteration_bounds = array<i64: 1>, scalar_prefetch = 0 : i64, scratch_operands = 0 : i64, tpu.core_type = #tpu.core_type<tc>, window_params = [{transform_indices = @transform_0, window_bounds = array<i64: 8, 1024>}, {transform_indices = @transform_1, window_bounds = array<i64: 8, 128>}, {pipeline_mode = #tpu.pipeline_mode<synchronous>, transform_indices = @transform_2, window_bounds = array<i64: 1024, 128>}, {pipeline_mode = #tpu.pipeline_mode<synchronous>, transform_indices = @transform_3, window_bounds = array<i64: 128, 256>}, {pipeline_mode = #tpu.pipeline_mode<synchronous>, transform_indices = @transform_4, window_bounds = array<i64: 128, 128>}, {pipeline_mode = #tpu.pipeline_mode<synchronous>, transform_indices = @transform_5, window_bounds = array<i64: 128, 128>}, {pipeline_mode = #tpu.pipeline_mode<synchronous>, transform_indices = @transform_6, window_bounds = array<i64: 128, 128>}, {pipeline_mode = #tpu.pipeline_mode<synchronous>, transform_indices = @transform_7, window_bounds = array<i64: 1, 896>}, {transform_indices = @transform_8, window_bounds = array<i64: 1, 1, 8>}]} {
    %c0 = arith.constant 0 : index
    %c0_0 = arith.constant 0 : index
    %0 = vector.load %arg1[%c0, %c0_0] : memref<8x1024xf32, #tpu.memory_space<vmem>>, vector<8x1024xf32>
    %1 = arith.truncf %0 : vector<8x1024xf32> to vector<8x1024xbf16>
    %c0_1 = arith.constant 0 : index
    %c0_2 = arith.constant 0 : index
    %2 = vector.load %arg3[%c0_1, %c0_2] : memref<1024x128xbf16, #tpu.memory_space<vmem>>, vector<1024x128xbf16>
    %cst = arith.constant dense<0.000000e+00> : vector<8x128xf32>
    %3 = tpu.matmul %1, %2, %cst {dimension_numbers = #tpu.dot_dimension_numbers<[1], [0], [0], [1], [0, 0, 1, 1], [], []>} : vector<8x1024xbf16>, vector<1024x128xbf16>, vector<8x128xf32> -> vector<8x128xf32>
    %c0_3 = arith.constant 0 : index
    %c0_4 = arith.constant 0 : index
    %4 = vector.load %arg8[%c0_3, %c0_4] : memref<1x896xf32, #tpu.memory_space<vmem>>, vector<1x128xf32>
    %5 = vector.broadcast %4 : vector<1x128xf32> to vector<8x128xf32>
    %6 = arith.addf %3, %5 : vector<8x128xf32>
    %cst_5 = arith.constant 0.000000e+00 : f32
    %7 = vector.broadcast %cst_5 : f32 to vector<8x128xf32>
    %8 = arith.cmpf ogt, %6, %7 : vector<8x128xf32>
    %cst_6 = arith.constant 5.000000e-02 : f32
    %9 = vector.broadcast %cst_6 : f32 to vector<8x128xf32>
    %10 = arith.mulf %9, %6 : vector<8x128xf32>
    %11 = arith.select %8, %6, %10 : vector<8x128xi1>, vector<8x128xf32>
    %12 = arith.truncf %11 : vector<8x128xf32> to vector<8x128xbf16>
    %c0_7 = arith.constant 0 : index
    %c0_8 = arith.constant 0 : index
    %13 = vector.load %arg4[%c0_7, %c0_8] : memref<128x256xbf16, #tpu.memory_space<vmem>>, vector<128x256xbf16>
    %cst_9 = arith.constant dense<0.000000e+00> : vector<8x256xf32>
    %14 = tpu.matmul %12, %13, %cst_9 {dimension_numbers = #tpu.dot_dimension_numbers<[1], [0], [0], [1], [0, 0, 1, 1], [], []>} : vector<8x128xbf16>, vector<128x256xbf16>, vector<8x256xf32> -> vector<8x256xf32>
    %c0_10 = arith.constant 0 : index
    %c128 = arith.constant 128 : index
    %15 = vector.load %arg8[%c0_10, %c128] : memref<1x896xf32, #tpu.memory_space<vmem>>, vector<1x256xf32>
    %16 = vector.broadcast %15 : vector<1x256xf32> to vector<8x256xf32>
    %17 = arith.addf %14, %16 : vector<8x256xf32>
    %18 = vector.extract_strided_slice %17 {offsets = [0, 0], sizes = [8, 128], strides = [1, 1]} : vector<8x256xf32> to vector<8x128xf32>
    %19 = vector.extract_strided_slice %17 {offsets = [0, 128], sizes = [8, 128], strides = [1, 1]} : vector<8x256xf32> to vector<8x128xf32>
    %cst_11 = arith.constant 5.000000e-01 : f32
    %20 = vector.broadcast %cst_11 : f32 to vector<8x128xf32>
    %21 = arith.mulf %20, %19 : vector<8x128xf32>
    %22 = math.exp %21 : vector<8x128xf32>
    %c0_12 = arith.constant 0 : index
    %c0_13 = arith.constant 0 : index
    %23 = vector.load %arg2[%c0_12, %c0_13] : memref<8x128xf32, #tpu.memory_space<vmem>>, vector<8x128xf32>
    %24 = arith.mulf %22, %23 : vector<8x128xf32>
    %25 = arith.addf %18, %24 : vector<8x128xf32>
    %26 = arith.truncf %25 : vector<8x128xf32> to vector<8x128xbf16>
    %c0_14 = arith.constant 0 : index
    %c0_15 = arith.constant 0 : index
    %27 = vector.load %arg5[%c0_14, %c0_15] : memref<128x128xbf16, #tpu.memory_space<vmem>>, vector<128x128xbf16>
    %cst_16 = arith.constant dense<0.000000e+00> : vector<8x128xf32>
    %28 = tpu.matmul %26, %27, %cst_16 {dimension_numbers = #tpu.dot_dimension_numbers<[1], [0], [0], [1], [0, 0, 1, 1], [], []>} : vector<8x128xbf16>, vector<128x128xbf16>, vector<8x128xf32> -> vector<8x128xf32>
    %c0_17 = arith.constant 0 : index
    %c384 = arith.constant 384 : index
    %29 = vector.load %arg8[%c0_17, %c384] : memref<1x896xf32, #tpu.memory_space<vmem>>, vector<1x128xf32>
    %30 = vector.broadcast %29 : vector<1x128xf32> to vector<8x128xf32>
    %31 = arith.addf %28, %30 : vector<8x128xf32>
    %cst_18 = arith.constant 0.000000e+00 : f32
    %32 = vector.broadcast %cst_18 : f32 to vector<8x128xf32>
    %33 = arith.cmpf ogt, %31, %32 : vector<8x128xf32>
    %cst_19 = arith.constant 5.000000e-02 : f32
    %34 = vector.broadcast %cst_19 : f32 to vector<8x128xf32>
    %35 = arith.mulf %34, %31 : vector<8x128xf32>
    %36 = arith.select %33, %31, %35 : vector<8x128xi1>, vector<8x128xf32>
    %37 = arith.truncf %36 : vector<8x128xf32> to vector<8x128xbf16>
    %c0_20 = arith.constant 0 : index
    %c0_21 = arith.constant 0 : index
    %38 = vector.load %arg6[%c0_20, %c0_21] : memref<128x128xbf16, #tpu.memory_space<vmem>>, vector<128x128xbf16>
    %cst_22 = arith.constant dense<0.000000e+00> : vector<8x128xf32>
    %39 = tpu.matmul %37, %38, %cst_22 {dimension_numbers = #tpu.dot_dimension_numbers<[1], [0], [0], [1], [0, 0, 1, 1], [], []>} : vector<8x128xbf16>, vector<128x128xbf16>, vector<8x128xf32> -> vector<8x128xf32>
    %c0_23 = arith.constant 0 : index
    %c512 = arith.constant 512 : index
    %40 = vector.load %arg8[%c0_23, %c512] : memref<1x896xf32, #tpu.memory_space<vmem>>, vector<1x128xf32>
    %41 = vector.broadcast %40 : vector<1x128xf32> to vector<8x128xf32>
    %42 = arith.addf %39, %41 : vector<8x128xf32>
    %cst_24 = arith.constant 0.000000e+00 : f32
    %43 = vector.broadcast %cst_24 : f32 to vector<8x128xf32>
    %44 = arith.cmpf ogt, %42, %43 : vector<8x128xf32>
    %cst_25 = arith.constant 5.000000e-02 : f32
    %45 = vector.broadcast %cst_25 : f32 to vector<8x128xf32>
    %46 = arith.mulf %45, %42 : vector<8x128xf32>
    %47 = arith.select %44, %42, %46 : vector<8x128xi1>, vector<8x128xf32>
    %48 = arith.truncf %47 : vector<8x128xf32> to vector<8x128xbf16>
    %c0_26 = arith.constant 0 : index
    %c0_27 = arith.constant 0 : index
    %49 = vector.load %arg7[%c0_26, %c0_27] : memref<128x128xbf16, #tpu.memory_space<vmem>>, vector<128x128xbf16>
    %cst_28 = arith.constant dense<0.000000e+00> : vector<8x128xf32>
    %50 = tpu.matmul %48, %49, %cst_28 {dimension_numbers = #tpu.dot_dimension_numbers<[1], [0], [0], [1], [0, 0, 1, 1], [], []>} : vector<8x128xbf16>, vector<128x128xbf16>, vector<8x128xf32> -> vector<8x128xf32>
    %c0_29 = arith.constant 0 : index
    %c640 = arith.constant 640 : index
    %51 = vector.load %arg8[%c0_29, %c640] : memref<1x896xf32, #tpu.memory_space<vmem>>, vector<1x128xf32>
    %52 = vector.broadcast %51 : vector<1x128xf32> to vector<8x128xf32>
    %53 = arith.addf %50, %52 : vector<8x128xf32>
    %cst_30 = arith.constant 0.000000e+00 : f32
    %54 = vector.broadcast %cst_30 : f32 to vector<8x128xf32>
    %55 = arith.cmpf ogt, %53, %54 : vector<8x128xf32>
    %cst_31 = arith.constant 5.000000e-02 : f32
    %56 = vector.broadcast %cst_31 : f32 to vector<8x128xf32>
    %57 = arith.mulf %56, %53 : vector<8x128xf32>
    %58 = arith.select %55, %53, %57 : vector<8x128xi1>, vector<8x128xf32>
    %c0_32 = arith.constant 0 : index
    %c768 = arith.constant 768 : index
    %59 = vector.load %arg8[%c0_32, %c768] : memref<1x896xf32, #tpu.memory_space<vmem>>, vector<1x128xf32>
    %60 = vector.broadcast %59 : vector<1x128xf32> to vector<8x128xf32>
    %61 = arith.mulf %58, %60 : vector<8x128xf32>
    %cst_33 = arith.constant dense<0.000000e+00> : vector<8xf32>
    %62 = vector.multi_reduction <add>, %61, %cst_33 [1] : vector<8x128xf32> to vector<8xf32>
    %63 = vector.shape_cast %62 : vector<8xf32> to vector<8x1xf32>
    %64 = arith.negf %63 : vector<8x1xf32>
    %65 = math.exp %64 : vector<8x1xf32>
    %cst_34 = arith.constant 1.000000e+00 : f32
    %66 = vector.broadcast %cst_34 : f32 to vector<8x1xf32>
    %67 = arith.addf %66, %65 : vector<8x1xf32>
    %68 = arith.divf %66, %67 : vector<8x1xf32>
    %69 = tpu.iota {dimensions = array<i32: 0>} : vector<8x8xi32>
    %70 = tpu.iota {dimensions = array<i32: 1>} : vector<8x8xi32>
    %71 = arith.cmpi eq, %69, %70 : vector<8x8xi32>
    %cst_35 = arith.constant 0.000000e+00 : f32
    %72 = vector.shape_cast %68 : vector<8x1xf32> to vector<8x1xf32>
    %73 = vector.broadcast %72 : vector<8x1xf32> to vector<8x8xf32>
    %74 = vector.broadcast %cst_35 : f32 to vector<8x8xf32>
    %75 = arith.select %71, %73, %74 : vector<8x8xi1>, vector<8x8xf32>
    %cst_36 = arith.constant dense<0.000000e+00> : vector<8xf32>
    %76 = vector.multi_reduction <add>, %75, %cst_36 [0] : vector<8x8xf32> to vector<8xf32>
    %77 = vector.shape_cast %76 : vector<8xf32> to vector<1x8xf32>
    %78 = vector.shape_cast %77 : vector<1x8xf32> to vector<1x1x8xf32>
    %c0_37 = arith.constant 0 : index
    %c0_38 = arith.constant 0 : index
    %c0_39 = arith.constant 0 : index
    %79 = vector.load %arg9[%c0_37, %c0_38, %c0_39] : memref<1x1x8xf32, #tpu.memory_space<vmem>>, vector<1x1x8xf32>
    tpu.vector_store %arg9[%c0_37, %c0_38, %c0_39], %78 {strides = array<i32>} : memref<1x1x8xf32, #tpu.memory_space<vmem>>, vector<1x1x8xf32>,
    return
  }
  func.func @transform_0(%arg0: i32) -> (i32, i32) {
    %c0_i32 = arith.constant 0 : i32
    %c0_i32_0 = arith.constant 0 : i32
    return %arg0, %c0_i32 : i32, i32
  }
  func.func @transform_1(%arg0: i32) -> (i32, i32) {
    %c0_i32 = arith.constant 0 : i32
    %c0_i32_0 = arith.constant 0 : i32
    return %arg0, %c0_i32 : i32, i32
  }
  func.func @transform_2(%arg0: i32) -> (i32, i32) {
    %c0_i32 = arith.constant 0 : i32
    %c0_i32_0 = arith.constant 0 : i32
    %c0_i32_1 = arith.constant 0 : i32
    return %c0_i32, %c0_i32_0 : i32, i32
  }
  func.func @transform_3(%arg0: i32) -> (i32, i32) {
    %c0_i32 = arith.constant 0 : i32
    %c0_i32_0 = arith.constant 0 : i32
    %c0_i32_1 = arith.constant 0 : i32
    return %c0_i32, %c0_i32_0 : i32, i32
  }
  func.func @transform_4(%arg0: i32) -> (i32, i32) {
    %c0_i32 = arith.constant 0 : i32
    %c0_i32_0 = arith.constant 0 : i32
    %c0_i32_1 = arith.constant 0 : i32
    return %c0_i32, %c0_i32_0 : i32, i32
  }
  func.func @transform_5(%arg0: i32) -> (i32, i32) {
    %c0_i32 = arith.constant 0 : i32
    %c0_i32_0 = arith.constant 0 : i32
    %c0_i32_1 = arith.constant 0 : i32
    return %c0_i32, %c0_i32_0 : i32, i32
  }
  func.func @transform_6(%arg0: i32) -> (i32, i32) {
    %c0_i32 = arith.constant 0 : i32
    %c0_i32_0 = arith.constant 0 : i32
    %c0_i32_1 = arith.constant 0 : i32
    return %c0_i32, %c0_i32_0 : i32, i32
  }
  func.func @transform_7(%arg0: i32) -> (i32, i32) {
    %c0_i32 = arith.constant 0 : i32
    %c0_i32_0 = arith.constant 0 : i32
    %c0_i32_1 = arith.constant 0 : i32
    return %c0_i32, %c0_i32_0 : i32, i32
  }
  func.func @transform_8(%arg0: i32) -> (i32, i32, i32) {
    %c0_i32 = arith.constant 0 : i32
    %c0_i32_0 = arith.constant 0 : i32
    %c0_i32_1 = arith.constant 0 : i32
    return %arg0, %c0_i32, %c0_i32_0 : i32, i32, i32
  }
}

</mosaic_0001>

<llo_original>
// kernel: binary_classifier_vae_forward.1
$region0: #{binary_classifier_vae_forward.1}
  #allocation0 [shape = 'u32[]', space=smem, size = 0x4, offset = 0x4, fixed_abs, tag = 'smem constant byte address 0x4 - core index']
  #allocation1 [shape = 'u32[144,128]{1,0:T(1,128)}', space=vmem, size = 0x12000, scoped, tag = 'internal scratch']
  %s0 = inlined_call_operand.vmem [shape: f32[8,1024], index: 0, kind: input, shape index: {}]
  %s1 = inlined_call_operand.vmem [shape: f32[8,128], index: 1, kind: input, shape index: {}]
  %s2 = inlined_call_operand.vmem [shape: bf16[1024,128], index: 2, kind: input, shape index: {}]
  %s3 = inlined_call_operand.vmem [shape: bf16[128,256], index: 3, kind: input, shape index: {}]
  %s4 = inlined_call_operand.vmem [shape: bf16[128,128], index: 4, kind: input, shape index: {}]
  %s5 = inlined_call_operand.vmem [shape: bf16[128,128], index: 5, kind: input, shape index: {}]
  %s6 = inlined_call_operand.vmem [shape: bf16[128,128], index: 6, kind: input, shape index: {}]
  %s7 = inlined_call_operand.vmem [shape: f32[1,896], index: 7, kind: input, shape index: {}]
  %s8 = inlined_call_operand.vmem [shape: f32[1,1,8], index: 8, kind: output, shape index: {}]
  %s9 = sld [smem:[#allocation0]]
  $region42: #{binary_classifier_vae_forward.1} parent=0
    _
  %s11 = ssub.s32 1, %s9
  %s12 = scalar_select 0, %s11, %s9
  // Predicated region
  $region2: #{binary_classifier_vae_forward.1} parent=0 // pred_check
    _
  $region3: #{binary_classifier_vae_forward.1} parent=0 // pred_check_branch
    %14 = sbr.rel (0) target = $region5
  $region4: #{binary_classifier_vae_forward.1} parent=0 // pred_region
    _
  $region5: #{binary_classifier_vae_forward.1} parent=0 // pred_fallthru
    _
  // Predicated region
  $region6: #{binary_classifier_vae_forward.1} parent=0 // pred_check
    _
  $region7: #{binary_classifier_vae_forward.1} parent=0 // pred_check_branch
    %16 = sbr.rel (0) target = $region9
  $region8: #{binary_classifier_vae_forward.1} parent=0 // pred_region
    _
  $region9: #{binary_classifier_vae_forward.1} parent=0 // pred_fallthru
    _
  // Predicated region
  $region10: #{binary_classifier_vae_forward.1} parent=0 // pred_check
    _
  $region11: #{binary_classifier_vae_forward.1} parent=0 // pred_check_branch
    %18 = sbr.rel (0) target = $region13
  $region12: #{binary_classifier_vae_forward.1} parent=0 // pred_region
    _
  $region13: #{binary_classifier_vae_forward.1} parent=0 // pred_fallthru
    _
  // Predicated region
  $region14: #{binary_classifier_vae_forward.1} parent=0 // pred_check
    _
  $region15: #{binary_classifier_vae_forward.1} parent=0 // pred_check_branch
    %20 = sbr.rel (0) target = $region17
  $region16: #{binary_classifier_vae_forward.1} parent=0 // pred_region
    _
  $region17: #{binary_classifier_vae_forward.1} parent=0 // pred_fallthru
    _
  // Predicated region
  $region18: #{binary_classifier_vae_forward.1} parent=0 // pred_check
    _
  $region19: #{binary_classifier_vae_forward.1} parent=0 // pred_check_branch
    %22 = sbr.rel (0) target = $region21
  $region20: #{binary_classifier_vae_forward.1} parent=0 // pred_region
    _
  $region21: #{binary_classifier_vae_forward.1} parent=0 // pred_fallthru
    _
  // Predicated region
  $region22: #{binary_classifier_vae_forward.1} parent=0 // pred_check
    _
  $region23: #{binary_classifier_vae_forward.1} parent=0 // pred_check_branch
    %24 = sbr.rel (0) target = $region25
  $region24: #{binary_classifier_vae_forward.1} parent=0 // pred_region
    _
  $region25: #{binary_classifier_vae_forward.1} parent=0 // pred_fallthru
    _
  // Predicated region
  $region26: #{binary_classifier_vae_forward.1} parent=0 // pred_check
    _
  $region27: #{binary_classifier_vae_forward.1} parent=0 // pred_check_branch
    %26 = sbr.rel (0) target = $region29
  $region28: #{binary_classifier_vae_forward.1} parent=0 // pred_region
    _
  $region29: #{binary_classifier_vae_forward.1} parent=0 // pred_fallthru
    _
  // Predicated region
  $region30: #{binary_classifier_vae_forward.1} parent=0 // pred_check
    _
  $region31: #{binary_classifier_vae_forward.1} parent=0 // pred_check_branch
    %28 = sbr.rel (0) target = $region33
  $region32: #{binary_classifier_vae_forward.1} parent=0 // pred_region
    _
  $region33: #{binary_classifier_vae_forward.1} parent=0 // pred_fallthru
    _
  %v30 = vld [vmem:[%s0] sm:$0xff]
  %v31 = vld [vmem:[%s0 + $0x8] sm:$0xff]
  %v32 = vld [vmem:[%s0 + $0x10] sm:$0xff]
  %v33 = vld [vmem:[%s0 + $0x18] sm:$0xff]
  %v34 = vld [vmem:[%s0 + $0x20] sm:$0xff]
  %v35 = vld [vmem:[%s0 + $0x28] sm:$0xff]
  %v36 = vld [vmem:[%s0 + $0x30] sm:$0xff]
  %v37 = vld [vmem:[%s0 + $0x38] sm:$0xff]
  %v38 = vpack.c.bf16 %v30, %v30
  %v39 = vpack.c.bf16 %v31, %v31
  %v40 = vpack.c.bf16 %v32, %v32
  %v41 = vpack.c.bf16 %v33, %v33
  %v42 = vpack.c.bf16 %v34, %v34
  %v43 = vpack.c.bf16 %v35, %v35
  %v44 = vpack.c.bf16 %v36, %v36
  %v45 = vpack.c.bf16 %v37, %v37
  %v46 = vld [vmem:[%s2] sm:$0xf]
  %v47 = vld [vmem:[%s2 + $0x4] sm:$0xf]
  %v48 = vld [vmem:[%s2 + $0x8] sm:$0xf]
  %v49 = vld [vmem:[%s2 + $0xc] sm:$0xf]
  %v50 = vld [vmem:[%s2 + $0x10] sm:$0xf]
  %v51 = vld [vmem:[%s2 + $0x14] sm:$0xf]
  %v52 = vld [vmem:[%s2 + $0x18] sm:$0xf]
  %v53 = vld [vmem:[%s2 + $0x1c] sm:$0xf]
  %v54 = vld [vmem:[%s2 + $0x20] sm:$0xf]
  %v55 = vld [vmem:[%s2 + $0x24] sm:$0xf]
  %v56 = vld [vmem:[%s2 + $0x28] sm:$0xf]
  %v57 = vld [vmem:[%s2 + $0x2c] sm:$0xf]
  %v58 = vld [vmem:[%s2 + $0x30] sm:$0xf]
  %v59 = vld [vmem:[%s2 + $0x34] sm:$0xf]
  %v60 = vld [vmem:[%s2 + $0x38] sm:$0xf]
  %v61 = vld [vmem:[%s2 + $0x3c] sm:$0xf]
  %v62 = vld [vmem:[%s2 + $0x40] sm:$0xf]
  %v63 = vld [vmem:[%s2 + $0x44] sm:$0xf]
  %v64 = vld [vmem:[%s2 + $0x48] sm:$0xf]
  %v65 = vld [vmem:[%s2 + $0x4c] sm:$0xf]
  %v66 = vld [vmem:[%s2 + $0x50] sm:$0xf]
  %v67 = vld [vmem:[%s2 + $0x54] sm:$0xf]
  %v68 = vld [vmem:[%s2 + $0x58] sm:$0xf]
  %v69 = vld [vmem:[%s2 + $0x5c] sm:$0xf]
  %v70 = vld [vmem:[%s2 + $0x60] sm:$0xf]
  %v71 = vld [vmem:[%s2 + $0x64] sm:$0xf]
  %v72 = vld [vmem:[%s2 + $0x68] sm:$0xf]
  %v73 = vld [vmem:[%s2 + $0x6c] sm:$0xf]
  %v74 = vld [vmem:[%s2 + $0x70] sm:$0xf]
  %v75 = vld [vmem:[%s2 + $0x74] sm:$0xf]
  %v76 = vld [vmem:[%s2 + $0x78] sm:$0xf]
  %v77 = vld [vmem:[%s2 + $0x7c] sm:$0xf]
  %v78 = vld [vmem:[%s2 + $0x80] sm:$0xf]
  %v79 = vld [vmem:[%s2 + $0x84] sm:$0xf]
  %v80 = vld [vmem:[%s2 + $0x88] sm:$0xf]
  %v81 = vld [vmem:[%s2 + $0x8c] sm:$0xf]
  %v82 = vld [vmem:[%s2 + $0x90] sm:$0xf]
  %v83 = vld [vmem:[%s2 + $0x94] sm:$0xf]
  %v84 = vld [vmem:[%s2 + $0x98] sm:$0xf]
  %v85 = vld [vmem:[%s2 + $0x9c] sm:$0xf]
  %v86 = vld [vmem:[%s2 + $0xa0] sm:$0xf]
  %v87 = vld [vmem:[%s2 + $0xa4] sm:$0xf]
  %v88 = vld [vmem:[%s2 + $0xa8] sm:$0xf]
  %v89 = vld [vmem:[%s2 + $0xac] sm:$0xf]
  %v90 = vld [vmem:[%s2 + $0xb0] sm:$0xf]
  %v91 = vld [vmem:[%s2 + $0xb4] sm:$0xf]
  %v92 = vld [vmem:[%s2 + $0xb8] sm:$0xf]
  %v93 = vld [vmem:[%s2 + $0xbc] sm:$0xf]
  %v94 = vld [vmem:[%s2 + $0xc0] sm:$0xf]
  %v95 = vld [vmem:[%s2 + $0xc4] sm:$0xf]
  %v96 = vld [vmem:[%s2 + $0xc8] sm:$0xf]
  %v97 = vld [vmem:[%s2 + $0xcc] sm:$0xf]
  %v98 = vld [vmem:[%s2 + $0xd0] sm:$0xf]
  %v99 = vld [vmem:[%s2 + $0xd4] sm:$0xf]
  %v100 = vld [vmem:[%s2 + $0xd8] sm:$0xf]
  %v101 = vld [vmem:[%s2 + $0xdc] sm:$0xf]
  %v102 = vld [vmem:[%s2 + $0xe0] sm:$0xf]
  %v103 = vld [vmem:[%s2 + $0xe4] sm:$0xf]
  %v104 = vld [vmem:[%s2 + $0xe8] sm:$0xf]
  %v105 = vld [vmem:[%s2 + $0xec] sm:$0xf]
  %v106 = vld [vmem:[%s2 + $0xf0] sm:$0xf]
  %v107 = vld [vmem:[%s2 + $0xf4] sm:$0xf]
  %v108 = vld [vmem:[%s2 + $0xf8] sm:$0xf]
  %v109 = vld [vmem:[%s2 + $0xfc] sm:$0xf]
  %v110 = vld [vmem:[%s2 + $0x100] sm:$0xf]
  %v111 = vld [vmem:[%s2 + $0x104] sm:$0xf]
  %v112 = vld [vmem:[%s2 + $0x108] sm:$0xf]
  %v113 = vld [vmem:[%s2 + $0x10c] sm:$0xf]
  %v114 = vld [vmem:[%s2 + $0x110] sm:$0xf]
  %v115 = vld [vmem:[%s2 + $0x114] sm:$0xf]
  %v116 = vld [vmem:[%s2 + $0x118] sm:$0xf]
  %v117 = vld [vmem:[%s2 + $0x11c] sm:$0xf]
  %v118 = vld [vmem:[%s2 + $0x120] sm:$0xf]
  %v119 = vld [vmem:[%s2 + $0x124] sm:$0xf]
  %v120 = vld [vmem:[%s2 + $0x128] sm:$0xf]
  %v121 = vld [vmem:[%s2 + $0x12c] sm:$0xf]
  %v122 = vld [vmem:[%s2 + $0x130] sm:$0xf]
  %v123 = vld [vmem:[%s2 + $0x134] sm:$0xf]
  %v124 = vld [vmem:[%s2 + $0x138] sm:$0xf]
  %v125 = vld [vmem:[%s2 + $0x13c] sm:$0xf]
  %v126 = vld [vmem:[%s2 + $0x140] sm:$0xf]
  %v127 = vld [vmem:[%s2 + $0x144] sm:$0xf]
  %v128 = vld [vmem:[%s2 + $0x148] sm:$0xf]
  %v129 = vld [vmem:[%s2 + $0x14c] sm:$0xf]
  %v130 = vld [vmem:[%s2 + $0x150] sm:$0xf]
  %v131 = vld [vmem:[%s2 + $0x154] sm:$0xf]
  %v132 = vld [vmem:[%s2 + $0x158] sm:$0xf]
  %v133 = vld [vmem:[%s2 + $0x15c] sm:$0xf]
  %v134 = vld [vmem:[%s2 + $0x160] sm:$0xf]
  %v135 = vld [vmem:[%s2 + $0x164] sm:$0xf]
  %v136 = vld [vmem:[%s2 + $0x168] sm:$0xf]
  %v137 = vld [vmem:[%s2 + $0x16c] sm:$0xf]
  %v138 = vld [vmem:[%s2 + $0x170] sm:$0xf]
  %v139 = vld [vmem:[%s2 + $0x174] sm:$0xf]
  %v140 = vld [vmem:[%s2 + $0x178] sm:$0xf]
  %v141 = vld [vmem:[%s2 + $0x17c] sm:$0xf]
  %v142 = vld [vmem:[%s2 + $0x180] sm:$0xf]
  %v143 = vld [vmem:[%s2 + $0x184] sm:$0xf]
  %v144 = vld [vmem:[%s2 + $0x188] sm:$0xf]
  %v145 = vld [vmem:[%s2 + $0x18c] sm:$0xf]
  %v146 = vld [vmem:[%s2 + $0x190] sm:$0xf]
  %v147 = vld [vmem:[%s2 + $0x194] sm:$0xf]
  %v148 = vld [vmem:[%s2 + $0x198] sm:$0xf]
  %v149 = vld [vmem:[%s2 + $0x19c] sm:$0xf]
  %v150 = vld [vmem:[%s2 + $0x1a0] sm:$0xf]
  %v151 = vld [vmem:[%s2 + $0x1a4] sm:$0xf]
  %v152 = vld [vmem:[%s2 + $0x1a8] sm:$0xf]
  %v153 = vld [vmem:[%s2 + $0x1ac] sm:$0xf]
  %v154 = vld [vmem:[%s2 + $0x1b0] sm:$0xf]
  %v155 = vld [vmem:[%s2 + $0x1b4] sm:$0xf]
  %v156 = vld [vmem:[%s2 + $0x1b8] sm:$0xf]
  %v157 = vld [vmem:[%s2 + $0x1bc] sm:$0xf]
  %v158 = vld [vmem:[%s2 + $0x1c0] sm:$0xf]
  %v159 = vld [vmem:[%s2 + $0x1c4] sm:$0xf]
  %v160 = vld [vmem:[%s2 + $0x1c8] sm:$0xf]
  %v161 = vld [vmem:[%s2 + $0x1cc] sm:$0xf]
  %v162 = vld [vmem:[%s2 + $0x1d0] sm:$0xf]
  %v163 = vld [vmem:[%s2 + $0x1d4] sm:$0xf]
  %v164 = vld [vmem:[%s2 + $0x1d8] sm:$0xf]
  %v165 = vld [vmem:[%s2 + $0x1dc] sm:$0xf]
  %v166 = vld [vmem:[%s2 + $0x1e0] sm:$0xf]
  %v167 = vld [vmem:[%s2 + $0x1e4] sm:$0xf]
  %v168 = vld [vmem:[%s2 + $0x1e8] sm:$0xf]
  %v169 = vld [vmem:[%s2 + $0x1ec] sm:$0xf]
  %v170 = vld [vmem:[%s2 + $0x1f0] sm:$0xf]
  %v171 = vld [vmem:[%s2 + $0x1f4] sm:$0xf]
  %v172 = vld [vmem:[%s2 + $0x1f8] sm:$0xf]
  %v173 = vld [vmem:[%s2 + $0x1fc] sm:$0xf]
  %v174 = vld [vmem:[%s7] sm:$0x1]
  %v176 = vlaneseq
  %v177 = vshrl.u32 %v176, 7
  %v178 = vsub.s32 0, %v177
  %v179 = vrot.slane %v174, %v178
  %v309 = vunpack.c.l.b16 %v46
  %v310 = vunpack.c.l.b16 %v47
  %v311 = vunpack.c.l.b16 %v48
  %v312 = vunpack.c.l.b16 %v49
  %v313 = vunpack.c.l.b16 %v50
  %v314 = vunpack.c.l.b16 %v51
  %v315 = vunpack.c.l.b16 %v52
  %v316 = vunpack.c.l.b16 %v53
  %v317 = vunpack.c.l.b16 %v54
  %v318 = vunpack.c.l.b16 %v55
  %v319 = vunpack.c.l.b16 %v56
  %v320 = vunpack.c.l.b16 %v57
  %v321 = vunpack.c.l.b16 %v58
  %v322 = vunpack.c.l.b16 %v59
  %v323 = vunpack.c.l.b16 %v60
  %v324 = vunpack.c.l.b16 %v61
  %v325 = vunpack.c.l.b16 %v62
  %v326 = vunpack.c.l.b16 %v63
  %v327 = vunpack.c.l.b16 %v64
  %v328 = vunpack.c.l.b16 %v65
  %v329 = vunpack.c.l.b16 %v66
  %v330 = vunpack.c.l.b16 %v67
  %v331 = vunpack.c.l.b16 %v68
  %v332 = vunpack.c.l.b16 %v69
  %v333 = vunpack.c.l.b16 %v70
  %v334 = vunpack.c.l.b16 %v71
  %v335 = vunpack.c.l.b16 %v72
  %v336 = vunpack.c.l.b16 %v73
  %v337 = vunpack.c.l.b16 %v74
  %v338 = vunpack.c.l.b16 %v75
  %v339 = vunpack.c.l.b16 %v76
  %v340 = vunpack.c.l.b16 %v77
  %v341 = vunpack.c.l.b16 %v78
  %v342 = vunpack.c.l.b16 %v79
  %v343 = vunpack.c.l.b16 %v80
  %v344 = vunpack.c.l.b16 %v81
  %v345 = vunpack.c.l.b16 %v82
  %v346 = vunpack.c.l.b16 %v83
  %v347 = vunpack.c.l.b16 %v84
  %v348 = vunpack.c.l.b16 %v85
  %v349 = vunpack.c.l.b16 %v86
  %v350 = vunpack.c.l.b16 %v87
  %v351 = vunpack.c.l.b16 %v88
  %v352 = vunpack.c.l.b16 %v89
  %v353 = vunpack.c.l.b16 %v90
  %v354 = vunpack.c.l.b16 %v91
  %v355 = vunpack.c.l.b16 %v92
  %v356 = vunpack.c.l.b16 %v93
  %v357 = vunpack.c.l.b16 %v94
  %v358 = vunpack.c.l.b16 %v95
  %v359 = vunpack.c.l.b16 %v96
  %v360 = vunpack.c.l.b16 %v97
  %v361 = vunpack.c.l.b16 %v98
  %v362 = vunpack.c.l.b16 %v99
  %v363 = vunpack.c.l.b16 %v100
  %v364 = vunpack.c.l.b16 %v101
  %v365 = vunpack.c.l.b16 %v102
  %v366 = vunpack.c.l.b16 %v103
  %v367 = vunpack.c.l.b16 %v104
  %v368 = vunpack.c.l.b16 %v105
  %v369 = vunpack.c.l.b16 %v106
  %v370 = vunpack.c.l.b16 %v107
  %v371 = vunpack.c.l.b16 %v108
  %v372 = vunpack.c.l.b16 %v109
  %v373 = vunpack.c.l.b16 %v110
  %v374 = vunpack.c.l.b16 %v111
  %v375 = vunpack.c.l.b16 %v112
  %v376 = vunpack.c.l.b16 %v113
  %v377 = vunpack.c.l.b16 %v114
  %v378 = vunpack.c.l.b16 %v115
  %v379 = vunpack.c.l.b16 %v116
  %v380 = vunpack.c.l.b16 %v117
  %v381 = vunpack.c.l.b16 %v118
  %v382 = vunpack.c.l.b16 %v119
  %v383 = vunpack.c.l.b16 %v120
  %v384 = vunpack.c.l.b16 %v121
  %v385 = vunpack.c.l.b16 %v122
  %v386 = vunpack.c.l.b16 %v123
  %v387 = vunpack.c.l.b16 %v124
  %v388 = vunpack.c.l.b16 %v125
  %v389 = vunpack.c.l.b16 %v126
  %v390 = vunpack.c.l.b16 %v127
  %v391 = vunpack.c.l.b16 %v128
  %v392 = vunpack.c.l.b16 %v129
  %v393 = vunpack.c.l.b16 %v130
  %v394 = vunpack.c.l.b16 %v131
  %v395 = vunpack.c.l.b16 %v132
  %v396 = vunpack.c.l.b16 %v133
  %v397 = vunpack.c.l.b16 %v134
  %v398 = vunpack.c.l.b16 %v135
  %v399 = vunpack.c.l.b16 %v136
  %v400 = vunpack.c.l.b16 %v137
  %v401 = vunpack.c.l.b16 %v138
  %v402 = vunpack.c.l.b16 %v139
  %v403 = vunpack.c.l.b16 %v140
  %v404 = vunpack.c.l.b16 %v141
  %v405 = vunpack.c.l.b16 %v142
  %v406 = vunpack.c.l.b16 %v143
  %v407 = vunpack.c.l.b16 %v144
  %v408 = vunpack.c.l.b16 %v145
  %v409 = vunpack.c.l.b16 %v146
  %v410 = vunpack.c.l.b16 %v147
  %v411 = vunpack.c.l.b16 %v148
  %v412 = vunpack.c.l.b16 %v149
  %v413 = vunpack.c.l.b16 %v150
  %v414 = vunpack.c.l.b16 %v151
  %v415 = vunpack.c.l.b16 %v152
  %v416 = vunpack.c.l.b16 %v153
  %v417 = vunpack.c.l.b16 %v154
  %v418 = vunpack.c.l.b16 %v155
  %v419 = vunpack.c.l.b16 %v156
  %v420 = vunpack.c.l.b16 %v157
  %v421 = vunpack.c.l.b16 %v158
  %v422 = vunpack.c.l.b16 %v159
  %v423 = vunpack.c.l.b16 %v160
  %v424 = vunpack.c.l.b16 %v161
  %v425 = vunpack.c.l.b16 %v162
  %v426 = vunpack.c.l.b16 %v163
  %v427 = vunpack.c.l.b16 %v164
  %v428 = vunpack.c.l.b16 %v165
  %v429 = vunpack.c.l.b16 %v166
  %v430 = vunpack.c.l.b16 %v167
  %v431 = vunpack.c.l.b16 %v168
  %v432 = vunpack.c.l.b16 %v169
  %v433 = vunpack.c.l.b16 %v170
  %v434 = vunpack.c.l.b16 %v171
  %v435 = vunpack.c.l.b16 %v172
  %v436 = vunpack.c.l.b16 %v173
  %v437 = vpack.c.b16 %v310, %v309
  %v438 = vpack.c.b16 %v312, %v311
  %v439 = vpack.c.b16 %v314, %v313
  %v440 = vpack.c.b16 %v316, %v315
  %v441 = vpack.c.b16 %v318, %v317
  %v442 = vpack.c.b16 %v320, %v319
  %v443 = vpack.c.b16 %v322, %v321
  %v444 = vpack.c.b16 %v324, %v323
  %v445 = vpack.c.b16 %v326, %v325
  %v446 = vpack.c.b16 %v328, %v327
  %v447 = vpack.c.b16 %v330, %v329
  %v448 = vpack.c.b16 %v332, %v331
  %v449 = vpack.c.b16 %v334, %v333
  %v450 = vpack.c.b16 %v336, %v335
  %v451 = vpack.c.b16 %v338, %v337
  %v452 = vpack.c.b16 %v340, %v339
  %v453 = vpack.c.b16 %v342, %v341
  %v454 = vpack.c.b16 %v344, %v343
  %v455 = vpack.c.b16 %v346, %v345
  %v456 = vpack.c.b16 %v348, %v347
  %v457 = vpack.c.b16 %v350, %v349
  %v458 = vpack.c.b16 %v352, %v351
  %v459 = vpack.c.b16 %v354, %v353
  %v460 = vpack.c.b16 %v356, %v355
  %v461 = vpack.c.b16 %v358, %v357
  %v462 = vpack.c.b16 %v360, %v359
  %v463 = vpack.c.b16 %v362, %v361
  %v464 = vpack.c.b16 %v364, %v363
  %v465 = vpack.c.b16 %v366, %v365
  %v466 = vpack.c.b16 %v368, %v367
  %v467 = vpack.c.b16 %v370, %v369
  %v468 = vpack.c.b16 %v372, %v371
  %v469 = vpack.c.b16 %v374, %v373
  %v470 = vpack.c.b16 %v376, %v375
  %v471 = vpack.c.b16 %v378, %v377
  %v472 = vpack.c.b16 %v380, %v379
  %v473 = vpack.c.b16 %v382, %v381
  %v474 = vpack.c.b16 %v384, %v383
  %v475 = vpack.c.b16 %v386, %v385
  %v476 = vpack.c.b16 %v388, %v387
  %v477 = vpack.c.b16 %v390, %v389
  %v478 = vpack.c.b16 %v392, %v391
  %v479 = vpack.c.b16 %v394, %v393
  %v480 = vpack.c.b16 %v396, %v395
  %v481 = vpack.c.b16 %v398, %v397
  %v482 = vpack.c.b16 %v400, %v399
  %v483 = vpack.c.b16 %v402, %v401
  %v484 = vpack.c.b16 %v404, %v403
  %v485 = vpack.c.b16 %v406, %v405
  %v486 = vpack.c.b16 %v408, %v407
  %v487 = vpack.c.b16 %v410, %v409
  %v488 = vpack.c.b16 %v412, %v411
  %v489 = vpack.c.b16 %v414, %v413
  %v490 = vpack.c.b16 %v416, %v415
  %v491 = vpack.c.b16 %v418, %v417
  %v492 = vpack.c.b16 %v420, %v419
  %v493 = vpack.c.b16 %v422, %v421
  %v494 = vpack.c.b16 %v424, %v423
  %v495 = vpack.c.b16 %v426, %v425
  %v496 = vpack.c.b16 %v428, %v427
  %v497 = vpack.c.b16 %v430, %v429
  %v498 = vpack.c.b16 %v432, %v431
  %v499 = vpack.c.b16 %v434, %v433
  %v500 = vpack.c.b16 %v436, %v435
  %565 = vmatprep.subr.bf16.mxu0 0
  %566 = vmatpush1.bf16.msra.mxu0 %v444
  %567 = vmatprep.subr.bf16.mxu0 0
  %568 = vmatpush1.bf16.msra.mxu0 %v443
  %569 = vmatprep.subr.bf16.mxu0 0
  %570 = vmatpush1.bf16.msra.mxu0 %v442
  %571 = vmatprep.subr.bf16.mxu0 0
  %572 = vmatpush1.bf16.msra.mxu0 %v441
  %573 = vmatprep.subr.bf16.mxu0 0
  %574 = vmatpush1.bf16.msra.mxu0 %v440
  %575 = vmatprep.subr.bf16.mxu0 0
  %576 = vmatpush1.bf16.msra.mxu0 %v439
  %577 = vmatprep.subr.bf16.mxu0 0
  %578 = vmatpush1.bf16.msra.mxu0 %v438
  %579 = vmatprep.subr.bf16.mxu0 0
  %580 = vmatpush1.bf16.msra.mxu0 %v437
  %581 = vmatprep.subr.bf16.mxu0 0
  %582 = vmatpush2.bf16.msra.mxu0 %v452
  %583 = vmatprep.subr.bf16.mxu0 0
  %584 = vmatpush2.bf16.msra.mxu0 %v451
  %585 = vmatprep.subr.bf16.mxu0 0
  %586 = vmatpush2.bf16.msra.mxu0 %v450
  %587 = vmatprep.subr.bf16.mxu0 0
  %588 = vmatpush2.bf16.msra.mxu0 %v449
  %589 = vmatprep.subr.bf16.mxu0 0
  %590 = vmatpush2.bf16.msra.mxu0 %v448
  %591 = vmatprep.subr.bf16.mxu0 0
  %592 = vmatpush2.bf16.msra.mxu0 %v447
  %593 = vmatprep.subr.bf16.mxu0 0
  %594 = vmatpush2.bf16.msra.mxu0 %v446
  %595 = vmatprep.subr.bf16.mxu0 0
  %596 = vmatpush2.bf16.msra.mxu0 %v445
  %597 = vmatprep.mubr.bf16.mxu0 %v39
  %598 = vmatmul.mubr.bf16.gmra.mxu0 %v38
  %v599 = vpop.f32.mrf.mxu0
  %v600 = vadd.f32 %v179, %v599
  %v601 = vpop.f32.mrf.mxu0
  %v602 = vpop.f32.mrf.mxu0
  %v603 = vpop.f32.mrf.mxu0
  %604 = vdwg.mxu0
  %605 = vmatprep.subr.bf16.mxu0 0
  %606 = vmatpush1.bf16.msra.mxu0 %v460
  %607 = vmatprep.subr.bf16.mxu0 0
  %608 = vmatpush1.bf16.msra.mxu0 %v459
  %609 = vmatprep.subr.bf16.mxu0 0
  %610 = vmatpush1.bf16.msra.mxu0 %v458
  %611 = vmatprep.subr.bf16.mxu0 0
  %612 = vmatpush1.bf16.msra.mxu0 %v457
  %613 = vmatprep.subr.bf16.mxu0 0
  %614 = vmatpush1.bf16.msra.mxu0 %v456
  %615 = vmatprep.subr.bf16.mxu0 0
  %616 = vmatpush1.bf16.msra.mxu0 %v455
  %617 = vmatprep.subr.bf16.mxu0 0
  %618 = vmatpush1.bf16.msra.mxu0 %v454
  %619 = vmatprep.subr.bf16.mxu0 0
  %620 = vmatpush1.bf16.msra.mxu0 %v453
  %621 = vmatprep.subr.bf16.mxu0 0
  %622 = vmatpush2.bf16.msra.mxu0 %v468
  %623 = vmatprep.subr.bf16.mxu0 0
  %624 = vmatpush2.bf16.msra.mxu0 %v467
  %625 = vmatprep.subr.bf16.mxu0 0
  %626 = vmatpush2.bf16.msra.mxu0 %v466
  %627 = vmatprep.subr.bf16.mxu0 0
  %628 = vmatpush2.bf16.msra.mxu0 %v465
  %629 = vmatprep.subr.bf16.mxu0 0
  %630 = vmatpush2.bf16.msra.mxu0 %v464
  %631 = vmatprep.subr.bf16.mxu0 0
  %632 = vmatpush2.bf16.msra.mxu0 %v463
  %633 = vmatprep.subr.bf16.mxu0 0
  %634 = vmatpush2.bf16.msra.mxu0 %v462
  %635 = vmatprep.subr.bf16.mxu0 0
  %636 = vmatpush2.bf16.msra.mxu0 %v461
  %637 = vmatprep.mubr.bf16.mxu0 %v41
  %638 = vmatmul.mubr.bf16.gmra.mxu0 %v40
  %v639 = vpop.f32.mrf.mxu0
  %v640 = vadd.f32 %v600, %v639
  %v641 = vpop.f32.mrf.mxu0
  %v642 = vpop.f32.mrf.mxu0
  %v643 = vpop.f32.mrf.mxu0
  %644 = vdwg.mxu0
  %645 = vmatprep.subr.bf16.mxu0 0
  %646 = vmatpush1.bf16.msra.mxu0 %v476
  %647 = vmatprep.subr.bf16.mxu0 0
  %648 = vmatpush1.bf16.msra.mxu0 %v475
  %649 = vmatprep.subr.bf16.mxu0 0
  %650 = vmatpush1.bf16.msra.mxu0 %v474
  %651 = vmatprep.subr.bf16.mxu0 0
  %652 = vmatpush1.bf16.msra.mxu0 %v473
  %653 = vmatprep.subr.bf16.mxu0 0
  %654 = vmatpush1.bf16.msra.mxu0 %v472
  %655 = vmatprep.subr.bf16.mxu0 0
  %656 = vmatpush1.bf16.msra.mxu0 %v471
  %657 = vmatprep.subr.bf16.mxu0 0
  %658 = vmatpush1.bf16.msra.mxu0 %v470
  %659 = vmatprep.subr.bf16.mxu0 0
  %660 = vmatpush1.bf16.msra.mxu0 %v469
  %661 = vmatprep.subr.bf16.mxu0 0
  %662 = vmatpush2.bf16.msra.mxu0 %v484
  %663 = vmatprep.subr.bf16.mxu0 0
  %664 = vmatpush2.bf16.msra.mxu0 %v483
  %665 = vmatprep.subr.bf16.mxu0 0
  %666 = vmatpush2.bf16.msra.mxu0 %v482
  %667 = vmatprep.subr.bf16.mxu0 0
  %668 = vmatpush2.bf16.msra.mxu0 %v481
  %669 = vmatprep.subr.bf16.mxu0 0
  %670 = vmatpush2.bf16.msra.mxu0 %v480
  %671 = vmatprep.subr.bf16.mxu0 0
  %672 = vmatpush2.bf16.msra.mxu0 %v479
  %673 = vmatprep.subr.bf16.mxu0 0
  %674 = vmatpush2.bf16.msra.mxu0 %v478
  %675 = vmatprep.subr.bf16.mxu0 0
  %676 = vmatpush2.bf16.msra.mxu0 %v477
  %677 = vmatprep.mubr.bf16.mxu0 %v43
  %678 = vmatmul.mubr.bf16.gmra.mxu0 %v42
  %v679 = vpop.f32.mrf.mxu0
  %v680 = vadd.f32 %v640, %v679
  %v681 = vpop.f32.mrf.mxu0
  %v682 = vpop.f32.mrf.mxu0
  %v683 = vpop.f32.mrf.mxu0
  %684 = vdwg.mxu0
  %685 = vmatprep.subr.bf16.mxu0 0
  %686 = vmatpush1.bf16.msra.mxu0 %v492
  %687 = vmatprep.subr.bf16.mxu0 0
  %688 = vmatpush1.bf16.msra.mxu0 %v491
  %689 = vmatprep.subr.bf16.mxu0 0
  %690 = vmatpush1.bf16.msra.mxu0 %v490
  %691 = vmatprep.subr.bf16.mxu0 0
  %692 = vmatpush1.bf16.msra.mxu0 %v489
  %693 = vmatprep.subr.bf16.mxu0 0
  %694 = vmatpush1.bf16.msra.mxu0 %v488
  %695 = vmatprep.subr.bf16.mxu0 0
  %696 = vmatpush1.bf16.msra.mxu0 %v487
  %697 = vmatprep.subr.bf16.mxu0 0
  %698 = vmatpush1.bf16.msra.mxu0 %v486
  %699 = vmatprep.subr.bf16.mxu0 0
  %700 = vmatpush1.bf16.msra.mxu0 %v485
  %701 = vmatprep.subr.bf16.mxu0 0
  %702 = vmatpush2.bf16.msra.mxu0 %v500
  %703 = vmatprep.subr.bf16.mxu0 0
  %704 = vmatpush2.bf16.msra.mxu0 %v499
  %705 = vmatprep.subr.bf16.mxu0 0
  %706 = vmatpush2.bf16.msra.mxu0 %v498
  %707 = vmatprep.subr.bf16.mxu0 0
  %708 = vmatpush2.bf16.msra.mxu0 %v497
  %709 = vmatprep.subr.bf16.mxu0 0
  %710 = vmatpush2.bf16.msra.mxu0 %v496
  %711 = vmatprep.subr.bf16.mxu0 0
  %712 = vmatpush2.bf16.msra.mxu0 %v495
  %713 = vmatprep.subr.bf16.mxu0 0
  %714 = vmatpush2.bf16.msra.mxu0 %v494
  %715 = vmatprep.subr.bf16.mxu0 0
  %716 = vmatpush2.bf16.msra.mxu0 %v493
  %717 = vmatprep.mubr.bf16.mxu0 %v45
  %718 = vmatmul.mubr.bf16.gmra.mxu0 %v44
  %v719 = vpop.f32.mrf.mxu0
  %v720 = vadd.f32 %v680, %v719
  %v721 = vpop.f32.mrf.mxu0
  %v722 = vpop.f32.mrf.mxu0
  %v723 = vpop.f32.mrf.mxu0
  %724 = vdwg.mxu0
  %vm725 = vcmp.gt.f32.partialorder %v720, 0.0
  %v726 = vmul.f32 %v720, 0.05
  %v727 = vsel %vm725, %v720, %v726
  %v728 = vpack.c.bf16 %v727, %v727
  %v729 = vld [vmem:[%s3] sm:$0xff]
  %v730 = vld [vmem:[%s3 + $0x8] sm:$0xff]
  %v731 = vld [vmem:[%s3 + $0x10] sm:$0xff]
  %v732 = vld [vmem:[%s3 + $0x18] sm:$0xff]
  %v733 = vld [vmem:[%s3 + $0x20] sm:$0xff]
  %v734 = vld [vmem:[%s3 + $0x28] sm:$0xff]
  %v735 = vld [vmem:[%s3 + $0x30] sm:$0xff]
  %v736 = vld [vmem:[%s3 + $0x38] sm:$0xff]
  %v737 = vld [vmem:[%s3 + $0x40] sm:$0xff]
  %v738 = vld [vmem:[%s3 + $0x48] sm:$0xff]
  %v739 = vld [vmem:[%s3 + $0x50] sm:$0xff]
  %v740 = vld [vmem:[%s3 + $0x58] sm:$0xff]
  %v741 = vld [vmem:[%s3 + $0x60] sm:$0xff]
  %v742 = vld [vmem:[%s3 + $0x68] sm:$0xff]
  %v743 = vld [vmem:[%s3 + $0x70] sm:$0xff]
  %v744 = vld [vmem:[%s3 + $0x78] sm:$0xff]
  %v745 = vld [vmem:[%s7 + $0x1] sm:$0x3]
  %v747 = vlaneseq
  %v748 = vshrl.u32 %v747, 7
  %v749 = vsub.s32 0, %v748
  %v750 = vrot.slane %v745, %v749
  %v751 = vlaneseq
  %v752 = vshrl.u32 %v751, 7
  %v753 = vsub.s32 1, %v752
  %v754 = vrot.slane %v745, %v753
  %v773 = vunpack.c.l.b16 %v729
  %v774 = vunpack.c.h.b16 %v729
  %v775 = vunpack.c.l.b16 %v730
  %v776 = vunpack.c.h.b16 %v730
  %v777 = vunpack.c.l.b16 %v731
  %v778 = vunpack.c.h.b16 %v731
  %v779 = vunpack.c.l.b16 %v732
  %v780 = vunpack.c.h.b16 %v732
  %v781 = vunpack.c.l.b16 %v733
  %v782 = vunpack.c.h.b16 %v733
  %v783 = vunpack.c.l.b16 %v734
  %v784 = vunpack.c.h.b16 %v734
  %v785 = vunpack.c.l.b16 %v735
  %v786 = vunpack.c.h.b16 %v735
  %v787 = vunpack.c.l.b16 %v736
  %v788 = vunpack.c.h.b16 %v736
  %v789 = vunpack.c.l.b16 %v737
  %v790 = vunpack.c.h.b16 %v737
  %v791 = vunpack.c.l.b16 %v738
  %v792 = vunpack.c.h.b16 %v738
  %v793 = vunpack.c.l.b16 %v739
  %v794 = vunpack.c.h.b16 %v739
  %v795 = vunpack.c.l.b16 %v740
  %v796 = vunpack.c.h.b16 %v740
  %v797 = vunpack.c.l.b16 %v741
  %v798 = vunpack.c.h.b16 %v741
  %v799 = vunpack.c.l.b16 %v742
  %v800 = vunpack.c.h.b16 %v742
  %v801 = vunpack.c.l.b16 %v743
  %v802 = vunpack.c.h.b16 %v743
  %v803 = vunpack.c.l.b16 %v744
  %v804 = vunpack.c.h.b16 %v744
  %v805 = vpack.c.b16 %v775, %v773
  %v806 = vpack.c.b16 %v776, %v774
  %v807 = vpack.c.b16 %v779, %v777
  %v808 = vpack.c.b16 %v780, %v778
  %v809 = vpack.c.b16 %v783, %v781
  %v810 = vpack.c.b16 %v784, %v782
  %v811 = vpack.c.b16 %v787, %v785
  %v812 = vpack.c.b16 %v788, %v786
  %v813 = vpack.c.b16 %v791, %v789
  %v814 = vpack.c.b16 %v792, %v790
  %v815 = vpack.c.b16 %v795, %v793
  %v816 = vpack.c.b16 %v796, %v794
  %v817 = vpack.c.b16 %v799, %v797
  %v818 = vpack.c.b16 %v800, %v798
  %v819 = vpack.c.b16 %v803, %v801
  %v820 = vpack.c.b16 %v804, %v802
  %837 = vmatprep.subr.bf16.mxu0 %v820
  %838 = vmatpush1.bf16.msra.mxu0 %v819
  %839 = vmatprep.subr.bf16.mxu0 %v818
  %840 = vmatpush1.bf16.msra.mxu0 %v817
  %841 = vmatprep.subr.bf16.mxu0 %v816
  %842 = vmatpush1.bf16.msra.mxu0 %v815
  %843 = vmatprep.subr.bf16.mxu0 %v814
  %844 = vmatpush1.bf16.msra.mxu0 %v813
  %845 = vmatprep.subr.bf16.mxu0 %v812
  %846 = vmatpush1.bf16.msra.mxu0 %v811
  %847 = vmatprep.subr.bf16.mxu0 %v810
  %848 = vmatpush1.bf16.msra.mxu0 %v809
  %849 = vmatprep.subr.bf16.mxu0 %v808
  %850 = vmatpush1.bf16.msra.mxu0 %v807
  %851 = vmatprep.subr.bf16.mxu0 %v806
  %852 = vmatpush1.bf16.msra.mxu0 %v805
  %853 = vmatprep.subr.bf16.mxu0 0
  %854 = vmatpush2.bf16.msra.mxu0 0
  %855 = vmatprep.subr.bf16.mxu0 0
  %856 = vmatpush2.bf16.msra.mxu0 0
  %857 = vmatprep.subr.bf16.mxu0 0
  %858 = vmatpush2.bf16.msra.mxu0 0
  %859 = vmatprep.subr.bf16.mxu0 0
  %860 = vmatpush2.bf16.msra.mxu0 0
  %861 = vmatprep.subr.bf16.mxu0 0
  %862 = vmatpush2.bf16.msra.mxu0 0
  %863 = vmatprep.subr.bf16.mxu0 0
  %864 = vmatpush2.bf16.msra.mxu0 0
  %865 = vmatprep.subr.bf16.mxu0 0
  %866 = vmatpush2.bf16.msra.mxu0 0
  %867 = vmatprep.subr.bf16.mxu0 0
  %868 = vmatpush2.bf16.msra.mxu0 0
  %869 = vmatprep.mubr.bf16.mxu0 0
  %870 = vmatmul.mubr.bf16.gmra.mxu0 %v728
  %v871 = vpop.f32.mrf.mxu0
  %v872 = vadd.f32 %v750, %v871
  %v873 = vpop.f32.mrf.mxu0
  %v874 = vadd.f32 %v754, %v873
  %v875 = vpop.f32.mrf.mxu0
  %v876 = vpop.f32.mrf.mxu0
  %877 = vdwg.mxu0
  %v878 = vmul.f32 %v874, 0.5
  %v879 = vmul.f32 %v878, 1.442695
  %v880 = vpow.pop %v879
  %v881 = vld [vmem:[%s1] sm:$0xff]
  %v882 = vmul.f32 %v880, %v881
  %v883 = vadd.f32 %v872, %v882
  %v884 = vpack.c.bf16 %v883, %v883
  %v885 = vld [vmem:[%s4] sm:$0xf]
  %v886 = vld [vmem:[%s4 + $0x4] sm:$0xf]
  %v887 = vld [vmem:[%s4 + $0x8] sm:$0xf]
  %v888 = vld [vmem:[%s4 + $0xc] sm:$0xf]
  %v889 = vld [vmem:[%s4 + $0x10] sm:$0xf]
  %v890 = vld [vmem:[%s4 + $0x14] sm:$0xf]
  %v891 = vld [vmem:[%s4 + $0x18] sm:$0xf]
  %v892 = vld [vmem:[%s4 + $0x1c] sm:$0xf]
  %v893 = vld [vmem:[%s4 + $0x20] sm:$0xf]
  %v894 = vld [vmem:[%s4 + $0x24] sm:$0xf]
  %v895 = vld [vmem:[%s4 + $0x28] sm:$0xf]
  %v896 = vld [vmem:[%s4 + $0x2c] sm:$0xf]
  %v897 = vld [vmem:[%s4 + $0x30] sm:$0xf]
  %v898 = vld [vmem:[%s4 + $0x34] sm:$0xf]
  %v899 = vld [vmem:[%s4 + $0x38] sm:$0xf]
  %v900 = vld [vmem:[%s4 + $0x3c] sm:$0xf]
  %v901 = vld [vmem:[%s7 + $0x3] sm:$0x1]
  %v903 = vlaneseq
  %v904 = vshrl.u32 %v903, 7
  %v905 = vsub.s32 0, %v904
  %v906 = vrot.slane %v901, %v905
  %v924 = vunpack.c.l.b16 %v885
  %v925 = vunpack.c.l.b16 %v886
  %v926 = vunpack.c.l.b16 %v887
  %v927 = vunpack.c.l.b16 %v888
  %v928 = vunpack.c.l.b16 %v889
  %v929 = vunpack.c.l.b16 %v890
  %v930 = vunpack.c.l.b16 %v891
  %v931 = vunpack.c.l.b16 %v892
  %v932 = vunpack.c.l.b16 %v893
  %v933 = vunpack.c.l.b16 %v894
  %v934 = vunpack.c.l.b16 %v895
  %v935 = vunpack.c.l.b16 %v896
  %v936 = vunpack.c.l.b16 %v897
  %v937 = vunpack.c.l.b16 %v898
  %v938 = vunpack.c.l.b16 %v899
  %v939 = vunpack.c.l.b16 %v900
  %v940 = vpack.c.b16 %v925, %v924
  %v941 = vpack.c.b16 %v927, %v926
  %v942 = vpack.c.b16 %v929, %v928
  %v943 = vpack.c.b16 %v931, %v930
  %v944 = vpack.c.b16 %v933, %v932
  %v945 = vpack.c.b16 %v935, %v934
  %v946 = vpack.c.b16 %v937, %v936
  %v947 = vpack.c.b16 %v939, %v938
  %956 = vmatprep.subr.bf16.mxu0 0
  %957 = vmatpush1.bf16.msra.mxu0 %v947
  %958 = vmatprep.subr.bf16.mxu0 0
  %959 = vmatpush1.bf16.msra.mxu0 %v946
  %960 = vmatprep.subr.bf16.mxu0 0
  %961 = vmatpush1.bf16.msra.mxu0 %v945
  %962 = vmatprep.subr.bf16.mxu0 0
  %963 = vmatpush1.bf16.msra.mxu0 %v944
  %964 = vmatprep.subr.bf16.mxu0 0
  %965 = vmatpush1.bf16.msra.mxu0 %v943
  %966 = vmatprep.subr.bf16.mxu0 0
  %967 = vmatpush1.bf16.msra.mxu0 %v942
  %968 = vmatprep.subr.bf16.mxu0 0
  %969 = vmatpush1.bf16.msra.mxu0 %v941
  %970 = vmatprep.subr.bf16.mxu0 0
  %971 = vmatpush1.bf16.msra.mxu0 %v940
  %972 = vmatprep.subr.bf16.mxu0 0
  %973 = vmatpush2.bf16.msra.mxu0 0
  %974 = vmatprep.subr.bf16.mxu0 0
  %975 = vmatpush2.bf16.msra.mxu0 0
  %976 = vmatprep.subr.bf16.mxu0 0
  %977 = vmatpush2.bf16.msra.mxu0 0
  %978 = vmatprep.subr.bf16.mxu0 0
  %979 = vmatpush2.bf16.msra.mxu0 0
  %980 = vmatprep.subr.bf16.mxu0 0
  %981 = vmatpush2.bf16.msra.mxu0 0
  %982 = vmatprep.subr.bf16.mxu0 0
  %983 = vmatpush2.bf16.msra.mxu0 0
  %984 = vmatprep.subr.bf16.mxu0 0
  %985 = vmatpush2.bf16.msra.mxu0 0
  %986 = vmatprep.subr.bf16.mxu0 0
  %987 = vmatpush2.bf16.msra.mxu0 0
  %988 = vmatprep.mubr.bf16.mxu0 0
  %989 = vmatmul.mubr.bf16.gmra.mxu0 %v884
  %v990 = vpop.f32.mrf.mxu0
  %v991 = vadd.f32 %v906, %v990
  %v992 = vpop.f32.mrf.mxu0
  %v993 = vpop.f32.mrf.mxu0
  %v994 = vpop.f32.mrf.mxu0
  %995 = vdwg.mxu0
  %vm996 = vcmp.gt.f32.partialorder %v991, 0.0
  %v997 = vmul.f32 %v991, 0.05
  %v998 = vsel %vm996, %v991, %v997
  %v999 = vpack.c.bf16 %v998, %v998
  %v1000 = vld [vmem:[%s5] sm:$0xf]
  %v1001 = vld [vmem:[%s5 + $0x4] sm:$0xf]
  %v1002 = vld [vmem:[%s5 + $0x8] sm:$0xf]
  %v1003 = vld [vmem:[%s5 + $0xc] sm:$0xf]
  %v1004 = vld [vmem:[%s5 + $0x10] sm:$0xf]
  %v1005 = vld [vmem:[%s5 + $0x14] sm:$0xf]
  %v1006 = vld [vmem:[%s5 + $0x18] sm:$0xf]
  %v1007 = vld [vmem:[%s5 + $0x1c] sm:$0xf]
  %v1008 = vld [vmem:[%s5 + $0x20] sm:$0xf]
  %v1009 = vld [vmem:[%s5 + $0x24] sm:$0xf]
  %v1010 = vld [vmem:[%s5 + $0x28] sm:$0xf]
  %v1011 = vld [vmem:[%s5 + $0x2c] sm:$0xf]
  %v1012 = vld [vmem:[%s5 + $0x30] sm:$0xf]
  %v1013 = vld [vmem:[%s5 + $0x34] sm:$0xf]
  %v1014 = vld [vmem:[%s5 + $0x38] sm:$0xf]
  %v1015 = vld [vmem:[%s5 + $0x3c] sm:$0xf]
  %v1016 = vld [vmem:[%s7 + $0x4] sm:$0x1]
  %v1018 = vlaneseq
  %v1019 = vshrl.u32 %v1018, 7
  %v1020 = vsub.s32 0, %v1019
  %v1021 = vrot.slane %v1016, %v1020
  %v1039 = vunpack.c.l.b16 %v1000
  %v1040 = vunpack.c.l.b16 %v1001
  %v1041 = vunpack.c.l.b16 %v1002
  %v1042 = vunpack.c.l.b16 %v1003
  %v1043 = vunpack.c.l.b16 %v1004
  %v1044 = vunpack.c.l.b16 %v1005
  %v1045 = vunpack.c.l.b16 %v1006
  %v1046 = vunpack.c.l.b16 %v1007
  %v1047 = vunpack.c.l.b16 %v1008
  %v1048 = vunpack.c.l.b16 %v1009
  %v1049 = vunpack.c.l.b16 %v1010
  %v1050 = vunpack.c.l.b16 %v1011
  %v1051 = vunpack.c.l.b16 %v1012
  %v1052 = vunpack.c.l.b16 %v1013
  %v1053 = vunpack.c.l.b16 %v1014
  %v1054 = vunpack.c.l.b16 %v1015
  %v1055 = vpack.c.b16 %v1040, %v1039
  %v1056 = vpack.c.b16 %v1042, %v1041
  %v1057 = vpack.c.b16 %v1044, %v1043
  %v1058 = vpack.c.b16 %v1046, %v1045
  %v1059 = vpack.c.b16 %v1048, %v1047
  %v1060 = vpack.c.b16 %v1050, %v1049
  %v1061 = vpack.c.b16 %v1052, %v1051
  %v1062 = vpack.c.b16 %v1054, %v1053
  %1071 = vmatprep.subr.bf16.mxu0 0
  %1072 = vmatpush1.bf16.msra.mxu0 %v1062
  %1073 = vmatprep.subr.bf16.mxu0 0
  %1074 = vmatpush1.bf16.msra.mxu0 %v1061
  %1075 = vmatprep.subr.bf16.mxu0 0
  %1076 = vmatpush1.bf16.msra.mxu0 %v1060
  %1077 = vmatprep.subr.bf16.mxu0 0
  %1078 = vmatpush1.bf16.msra.mxu0 %v1059
  %1079 = vmatprep.subr.bf16.mxu0 0
  %1080 = vmatpush1.bf16.msra.mxu0 %v1058
  %1081 = vmatprep.subr.bf16.mxu0 0
  %1082 = vmatpush1.bf16.msra.mxu0 %v1057
  %1083 = vmatprep.subr.bf16.mxu0 0
  %1084 = vmatpush1.bf16.msra.mxu0 %v1056
  %1085 = vmatprep.subr.bf16.mxu0 0
  %1086 = vmatpush1.bf16.msra.mxu0 %v1055
  %1087 = vmatprep.subr.bf16.mxu0 0
  %1088 = vmatpush2.bf16.msra.mxu0 0
  %1089 = vmatprep.subr.bf16.mxu0 0
  %1090 = vmatpush2.bf16.msra.mxu0 0
  %1091 = vmatprep.subr.bf16.mxu0 0
  %1092 = vmatpush2.bf16.msra.mxu0 0
  %1093 = vmatprep.subr.bf16.mxu0 0
  %1094 = vmatpush2.bf16.msra.mxu0 0
  %1095 = vmatprep.subr.bf16.mxu0 0
  %1096 = vmatpush2.bf16.msra.mxu0 0
  %1097 = vmatprep.subr.bf16.mxu0 0
  %1098 = vmatpush2.bf16.msra.mxu0 0
  %1099 = vmatprep.subr.bf16.mxu0 0
  %1100 = vmatpush2.bf16.msra.mxu0 0
  %1101 = vmatprep.subr.bf16.mxu0 0
  %1102 = vmatpush2.bf16.msra.mxu0 0
  %1103 = vmatprep.mubr.bf16.mxu0 0
  %1104 = vmatmul.mubr.bf16.gmra.mxu0 %v999
  %v1105 = vpop.f32.mrf.mxu0
  %v1106 = vadd.f32 %v1021, %v1105
  %v1107 = vpop.f32.mrf.mxu0
  %v1108 = vpop.f32.mrf.mxu0
  %v1109 = vpop.f32.mrf.mxu0
  %1110 = vdwg.mxu0
  %vm1111 = vcmp.gt.f32.partialorder %v1106, 0.0
  %v1112 = vmul.f32 %v1106, 0.05
  %v1113 = vsel %vm1111, %v1106, %v1112
  %v1114 = vpack.c.bf16 %v1113, %v1113
  %v1115 = vld [vmem:[%s6] sm:$0xf]
  %v1116 = vld [vmem:[%s6 + $0x4] sm:$0xf]
  %v1117 = vld [vmem:[%s6 + $0x8] sm:$0xf]
  %v1118 = vld [vmem:[%s6 + $0xc] sm:$0xf]
  %v1119 = vld [vmem:[%s6 + $0x10] sm:$0xf]
  %v1120 = vld [vmem:[%s6 + $0x14] sm:$0xf]
  %v1121 = vld [vmem:[%s6 + $0x18] sm:$0xf]
  %v1122 = vld [vmem:[%s6 + $0x1c] sm:$0xf]
  %v1123 = vld [vmem:[%s6 + $0x20] sm:$0xf]
  %v1124 = vld [vmem:[%s6 + $0x24] sm:$0xf]
  %v1125 = vld [vmem:[%s6 + $0x28] sm:$0xf]
  %v1126 = vld [vmem:[%s6 + $0x2c] sm:$0xf]
  %v1127 = vld [vmem:[%s6 + $0x30] sm:$0xf]
  %v1128 = vld [vmem:[%s6 + $0x34] sm:$0xf]
  %v1129 = vld [vmem:[%s6 + $0x38] sm:$0xf]
  %v1130 = vld [vmem:[%s6 + $0x3c] sm:$0xf]
  %v1131 = vld [vmem:[%s7 + $0x5] sm:$0x1]
  %v1133 = vlaneseq
  %v1134 = vshrl.u32 %v1133, 7
  %v1135 = vsub.s32 0, %v1134
  %v1136 = vrot.slane %v1131, %v1135
  %v1154 = vunpack.c.l.b16 %v1115
  %v1155 = vunpack.c.l.b16 %v1116
  %v1156 = vunpack.c.l.b16 %v1117
  %v1157 = vunpack.c.l.b16 %v1118
  %v1158 = vunpack.c.l.b16 %v1119
  %v1159 = vunpack.c.l.b16 %v1120
  %v1160 = vunpack.c.l.b16 %v1121
  %v1161 = vunpack.c.l.b16 %v1122
  %v1162 = vunpack.c.l.b16 %v1123
  %v1163 = vunpack.c.l.b16 %v1124
  %v1164 = vunpack.c.l.b16 %v1125
  %v1165 = vunpack.c.l.b16 %v1126
  %v1166 = vunpack.c.l.b16 %v1127
  %v1167 = vunpack.c.l.b16 %v1128
  %v1168 = vunpack.c.l.b16 %v1129
  %v1169 = vunpack.c.l.b16 %v1130
  %v1170 = vpack.c.b16 %v1155, %v1154
  %v1171 = vpack.c.b16 %v1157, %v1156
  %v1172 = vpack.c.b16 %v1159, %v1158
  %v1173 = vpack.c.b16 %v1161, %v1160
  %v1174 = vpack.c.b16 %v1163, %v1162
  %v1175 = vpack.c.b16 %v1165, %v1164
  %v1176 = vpack.c.b16 %v1167, %v1166
  %v1177 = vpack.c.b16 %v1169, %v1168
  %1186 = vmatprep.subr.bf16.mxu0 0
  %1187 = vmatpush1.bf16.msra.mxu0 %v1177
  %1188 = vmatprep.subr.bf16.mxu0 0
  %1189 = vmatpush1.bf16.msra.mxu0 %v1176
  %1190 = vmatprep.subr.bf16.mxu0 0
  %1191 = vmatpush1.bf16.msra.mxu0 %v1175
  %1192 = vmatprep.subr.bf16.mxu0 0
  %1193 = vmatpush1.bf16.msra.mxu0 %v1174
  %1194 = vmatprep.subr.bf16.mxu0 0
  %1195 = vmatpush1.bf16.msra.mxu0 %v1173
  %1196 = vmatprep.subr.bf16.mxu0 0
  %1197 = vmatpush1.bf16.msra.mxu0 %v1172
  %1198 = vmatprep.subr.bf16.mxu0 0
  %1199 = vmatpush1.bf16.msra.mxu0 %v1171
  %1200 = vmatprep.subr.bf16.mxu0 0
  %1201 = vmatpush1.bf16.msra.mxu0 %v1170
  %1202 = vmatprep.subr.bf16.mxu0 0
  %1203 = vmatpush2.bf16.msra.mxu0 0
  %1204 = vmatprep.subr.bf16.mxu0 0
  %1205 = vmatpush2.bf16.msra.mxu0 0
  %1206 = vmatprep.subr.bf16.mxu0 0
  %1207 = vmatpush2.bf16.msra.mxu0 0
  %1208 = vmatprep.subr.bf16.mxu0 0
  %1209 = vmatpush2.bf16.msra.mxu0 0
  %1210 = vmatprep.subr.bf16.mxu0 0
  %1211 = vmatpush2.bf16.msra.mxu0 0
  %1212 = vmatprep.subr.bf16.mxu0 0
  %1213 = vmatpush2.bf16.msra.mxu0 0
  %1214 = vmatprep.subr.bf16.mxu0 0
  %1215 = vmatpush2.bf16.msra.mxu0 0
  %1216 = vmatprep.subr.bf16.mxu0 0
  %1217 = vmatpush2.bf16.msra.mxu0 0
  %1218 = vmatprep.mubr.bf16.mxu0 0
  %1219 = vmatmul.mubr.bf16.gmra.mxu0 %v1114
  %v1220 = vpop.f32.mrf.mxu0
  %v1221 = vadd.f32 %v1136, %v1220
  %v1222 = vpop.f32.mrf.mxu0
  %v1223 = vpop.f32.mrf.mxu0
  %v1224 = vpop.f32.mrf.mxu0
  %1225 = vdwg.mxu0
  %vm1226 = vcmp.gt.f32.partialorder %v1221, 0.0
  %v1227 = vmul.f32 %v1221, 0.05
  %v1228 = vsel %vm1226, %v1221, %v1227
  %v1229 = vld [vmem:[%s7 + $0x6] sm:$0x1]
  %v1231 = vlaneseq
  %v1232 = vshrl.u32 %v1231, 7
  %v1233 = vsub.s32 0, %v1232
  %v1234 = vrot.slane %v1229, %v1233
  %v1236 = vmul.f32 %v1228, %v1234
  %1237 = vadd.xlane.f32.xlu0 %v1236
  %v1238 = vpop.xlane.xlu0 %1237
  %v1239 = vxor.u32 %v1238, 2147483648
  %v1240 = vmul.f32 %v1239, 1.442695
  %v1241 = vpow.pop %v1240
  %v1242 = vadd.f32 %v1241, 1.0
  %v1243 = vrcp.pop %v1242
  %v1244 = vmul.f32 1.0, %v1243
  %v1245 = vlaneseq
  %v1246 = vshrl.u32 %v1245, 7
  %v1247 = vlaneseq
  %v1248 = vand.u32 %v1247, 127
  %vm1249 = vcmp.eq.s32.totalorder %v1246, %v1248
  %v1250 = vsel %vm1249, %v1244, 0.0
  %vm1251 = vcmask 64512
  %v1252 = vsel %vm1251, %v1250, 0.0
  %v1253 = vrot.slane %v1252, 4
  %v1254 = vadd.f32 %v1252, %v1253
  %v1255 = vrot.slane %v1254, 2
  %v1256 = vadd.f32 %v1254, %v1255
  %v1257 = vrot.slane %v1256, 1
  %v1258 = vadd.f32 %v1256, %v1257
  %vm1259 = vcmask 57344
  %1260 = vst.msk [vmem:[%s8] sm:$0x1] %vm1259, %v1258
  // Predicated region
  $region34: #{binary_classifier_vae_forward.1} parent=0 // pred_check
    _
  $region35: #{binary_classifier_vae_forward.1} parent=0 // pred_check_branch
    %1262 = sbr.rel (0) target = $region37
  $region36: #{binary_classifier_vae_forward.1} parent=0 // pred_region
    _
  $region37: #{binary_classifier_vae_forward.1} parent=0 // pred_fallthru
    _
  // Predicated region
  $region38: #{binary_classifier_vae_forward.1} parent=0 // pred_check
    _
  $region39: #{binary_classifier_vae_forward.1} parent=0 // pred_check_branch
    %1264 = sbr.rel (0) target = $region41
  $region40: #{binary_classifier_vae_forward.1} parent=0 // pred_region
    _
  $region41: #{binary_classifier_vae_forward.1} parent=0 // pred_fallthru
    _

// kernel: binary_classifier_vae_forward.1
$region0: #{binary_classifier_vae_forward.1}
  #allocation0 [shape = 'u32[]', space=smem, size = 0x4, offset = 0x4, fixed_abs, tag = 'smem constant byte address 0x4 - core index']
  #allocation1 [shape = 'u32[144,128]{1,0:T(1,128)}', space=vmem, size = 0x12000, scoped, tag = 'internal scratch']
  %s0 = inlined_call_operand.vmem [shape: f32[8,1024], index: 0, kind: input, shape index: {}]
  %s1 = inlined_call_operand.vmem [shape: f32[8,128], index: 1, kind: input, shape index: {}]
  %s2 = inlined_call_operand.vmem [shape: bf16[1024,128], index: 2, kind: input, shape index: {}]
  %s3 = inlined_call_operand.vmem [shape: bf16[128,256], index: 3, kind: input, shape index: {}]
  %s4 = inlined_call_operand.vmem [shape: bf16[128,128], index: 4, kind: input, shape index: {}]
  %s5 = inlined_call_operand.vmem [shape: bf16[128,128], index: 5, kind: input, shape index: {}]
  %s6 = inlined_call_operand.vmem [shape: bf16[128,128], index: 6, kind: input, shape index: {}]
  %s7 = inlined_call_operand.vmem [shape: f32[1,896], index: 7, kind: input, shape index: {}]
  %s8 = inlined_call_operand.vmem [shape: f32[1,1,8], index: 8, kind: output, shape index: {}]
  %s9 = sld [smem:[#allocation0]]
  $region42: #{binary_classifier_vae_forward.1} parent=0
    _
  %s11 = ssub.s32 1, %s9
  %s12 = scalar_select 0, %s11, %s9
  // Predicated region
  $region2: #{binary_classifier_vae_forward.1} parent=0 // pred_check
    _
  $region3: #{binary_classifier_vae_forward.1} parent=0 // pred_check_branch
    %14 = sbr.rel (0) target = $region5
  $region4: #{binary_classifier_vae_forward.1} parent=0 // pred_region
    _
  $region5: #{binary_classifier_vae_forward.1} parent=0 // pred_fallthru
    _
  // Predicated region
  $region6: #{binary_classifier_vae_forward.1} parent=0 // pred_check
    _
  $region7: #{binary_classifier_vae_forward.1} parent=0 // pred_check_branch
    %16 = sbr.rel (0) target = $region9
  $region8: #{binary_classifier_vae_forward.1} parent=0 // pred_region
    _
  $region9: #{binary_classifier_vae_forward.1} parent=0 // pred_fallthru
    _
  // Predicated region
  $region10: #{binary_classifier_vae_forward.1} parent=0 // pred_check
    _
  $region11: #{binary_classifier_vae_forward.1} parent=0 // pred_check_branch
    %18 = sbr.rel (0) target = $region13
  $region12: #{binary_classifier_vae_forward.1} parent=0 // pred_region
    _
  $region13: #{binary_classifier_vae_forward.1} parent=0 // pred_fallthru
    _
  // Predicated region
  $region14: #{binary_classifier_vae_forward.1} parent=0 // pred_check
    _
  $region15: #{binary_classifier_vae_forward.1} parent=0 // pred_check_branch
    %20 = sbr.rel (0) target = $region17
  $region16: #{binary_classifier_vae_forward.1} parent=0 // pred_region
    _
  $region17: #{binary_classifier_vae_forward.1} parent=0 // pred_fallthru
    _
  // Predicated region
  $region18: #{binary_classifier_vae_forward.1} parent=0 // pred_check
    _
  $region19: #{binary_classifier_vae_forward.1} parent=0 // pred_check_branch
    %22 = sbr.rel (0) target = $region21
  $region20: #{binary_classifier_vae_forward.1} parent=0 // pred_region
    _
  $region21: #{binary_classifier_vae_forward.1} parent=0 // pred_fallthru
    _
  // Predicated region
  $region22: #{binary_classifier_vae_forward.1} parent=0 // pred_check
    _
  $region23: #{binary_classifier_vae_forward.1} parent=0 // pred_check_branch
    %24 = sbr.rel (0) target = $region25
  $region24: #{binary_classifier_vae_forward.1} parent=0 // pred_region
    _
  $region25: #{binary_classifier_vae_forward.1} parent=0 // pred_fallthru
    _
  // Predicated region
  $region26: #{binary_classifier_vae_forward.1} parent=0 // pred_check
    _
  $region27: #{binary_classifier_vae_forward.1} parent=0 // pred_check_branch
    %26 = sbr.rel (0) target = $region29
  $region28: #{binary_classifier_vae_forward.1} parent=0 // pred_region
    _
  $region29: #{binary_classifier_vae_forward.1} parent=0 // pred_fallthru
    _
  // Predicated region
  $region30: #{binary_classifier_vae_forward.1} parent=0 // pred_check
    _
  $region31: #{binary_classifier_vae_forward.1} parent=0 // pred_check_branch
    %28 = sbr.rel (0) target = $region33
  $region32: #{binary_classifier_vae_forward.1} parent=0 // pred_region
    _
  $region33: #{binary_classifier_vae_forward.1} parent=0 // pred_fallthru
    _
  %v30 = vld [vmem:[%s0] sm:$0xff]
  %v31 = vld [vmem:[%s0 + $0x8] sm:$0xff]
  %v32 = vld [vmem:[%s0 + $0x10] sm:$0xff]
  %v33 = vld [vmem:[%s0 + $0x18] sm:$0xff]
  %v34 = vld [vmem:[%s0 + $0x20] sm:$0xff]
  %v35 = vld [vmem:[%s0 + $0x28] sm:$0xff]
  %v36 = vld [vmem:[%s0 + $0x30] sm:$0xff]
  %v37 = vld [vmem:[%s0 + $0x38] sm:$0xff]
  %v38 = vpack.c.bf16 %v30, %v30
  %v39 = vpack.c.bf16 %v31, %v31
  %v40 = vpack.c.bf16 %v32, %v32
  %v41 = vpack.c.bf16 %v33, %v33
  %v42 = vpack.c.bf16 %v34, %v34
  %v43 = vpack.c.bf16 %v35, %v35
  %v44 = vpack.c.bf16 %v36, %v36
  %v45 = vpack.c.bf16 %v37, %v37
  %v46 = vld [vmem:[%s2] sm:$0xf]
  %v47 = vld [vmem:[%s2 + $0x4] sm:$0xf]
  %v48 = vld [vmem:[%s2 + $0x8] sm:$0xf]
  %v49 = vld [vmem:[%s2 + $0xc] sm:$0xf]
  %v50 = vld [vmem:[%s2 + $0x10] sm:$0xf]
  %v51 = vld [vmem:[%s2 + $0x14] sm:$0xf]
  %v52 = vld [vmem:[%s2 + $0x18] sm:$0xf]
  %v53 = vld [vmem:[%s2 + $0x1c] sm:$0xf]
  %v54 = vld [vmem:[%s2 + $0x20] sm:$0xf]
  %v55 = vld [vmem:[%s2 + $0x24] sm:$0xf]
  %v56 = vld [vmem:[%s2 + $0x28] sm:$0xf]
  %v57 = vld [vmem:[%s2 + $0x2c] sm:$0xf]
  %v58 = vld [vmem:[%s2 + $0x30] sm:$0xf]
  %v59 = vld [vmem:[%s2 + $0x34] sm:$0xf]
  %v60 = vld [vmem:[%s2 + $0x38] sm:$0xf]
  %v61 = vld [vmem:[%s2 + $0x3c] sm:$0xf]
  %v62 = vld [vmem:[%s2 + $0x40] sm:$0xf]
  %v63 = vld [vmem:[%s2 + $0x44] sm:$0xf]
  %v64 = vld [vmem:[%s2 + $0x48] sm:$0xf]
  %v65 = vld [vmem:[%s2 + $0x4c] sm:$0xf]
  %v66 = vld [vmem:[%s2 + $0x50] sm:$0xf]
  %v67 = vld [vmem:[%s2 + $0x54] sm:$0xf]
  %v68 = vld [vmem:[%s2 + $0x58] sm:$0xf]
  %v69 = vld [vmem:[%s2 + $0x5c] sm:$0xf]
  %v70 = vld [vmem:[%s2 + $0x60] sm:$0xf]
  %v71 = vld [vmem:[%s2 + $0x64] sm:$0xf]
  %v72 = vld [vmem:[%s2 + $0x68] sm:$0xf]
  %v73 = vld [vmem:[%s2 + $0x6c] sm:$0xf]
  %v74 = vld [vmem:[%s2 + $0x70] sm:$0xf]
  %v75 = vld [vmem:[%s2 + $0x74] sm:$0xf]
  %v76 = vld [vmem:[%s2 + $0x78] sm:$0xf]
  %v77 = vld [vmem:[%s2 + $0x7c] sm:$0xf]
  %v78 = vld [vmem:[%s2 + $0x80] sm:$0xf]
  %v79 = vld [vmem:[%s2 + $0x84] sm:$0xf]
  %v80 = vld [vmem:[%s2 + $0x88] sm:$0xf]
  %v81 = vld [vmem:[%s2 + $0x8c] sm:$0xf]
  %v82 = vld [vmem:[%s2 + $0x90] sm:$0xf]
  %v83 = vld [vmem:[%s2 + $0x94] sm:$0xf]
  %v84 = vld [vmem:[%s2 + $0x98] sm:$0xf]
  %v85 = vld [vmem:[%s2 + $0x9c] sm:$0xf]
  %v86 = vld [vmem:[%s2 + $0xa0] sm:$0xf]
  %v87 = vld [vmem:[%s2 + $0xa4] sm:$0xf]
  %v88 = vld [vmem:[%s2 + $0xa8] sm:$0xf]
  %v89 = vld [vmem:[%s2 + $0xac] sm:$0xf]
  %v90 = vld [vmem:[%s2 + $0xb0] sm:$0xf]
  %v91 = vld [vmem:[%s2 + $0xb4] sm:$0xf]
  %v92 = vld [vmem:[%s2 + $0xb8] sm:$0xf]
  %v93 = vld [vmem:[%s2 + $0xbc] sm:$0xf]
  %v94 = vld [vmem:[%s2 + $0xc0] sm:$0xf]
  %v95 = vld [vmem:[%s2 + $0xc4] sm:$0xf]
  %v96 = vld [vmem:[%s2 + $0xc8] sm:$0xf]
  %v97 = vld [vmem:[%s2 + $0xcc] sm:$0xf]
  %v98 = vld [vmem:[%s2 + $0xd0] sm:$0xf]
  %v99 = vld [vmem:[%s2 + $0xd4] sm:$0xf]
  %v100 = vld [vmem:[%s2 + $0xd8] sm:$0xf]
  %v101 = vld [vmem:[%s2 + $0xdc] sm:$0xf]
  %v102 = vld [vmem:[%s2 + $0xe0] sm:$0xf]
  %v103 = vld [vmem:[%s2 + $0xe4] sm:$0xf]
  %v104 = vld [vmem:[%s2 + $0xe8] sm:$0xf]
  %v105 = vld [vmem:[%s2 + $0xec] sm:$0xf]
  %v106 = vld [vmem:[%s2 + $0xf0] sm:$0xf]
  %v107 = vld [vmem:[%s2 + $0xf4] sm:$0xf]
  %v108 = vld [vmem:[%s2 + $0xf8] sm:$0xf]
  %v109 = vld [vmem:[%s2 + $0xfc] sm:$0xf]
  %v110 = vld [vmem:[%s2 + $0x100] sm:$0xf]
  %v111 = vld [vmem:[%s2 + $0x104] sm:$0xf]
  %v112 = vld [vmem:[%s2 + $0x108] sm:$0xf]
  %v113 = vld [vmem:[%s2 + $0x10c] sm:$0xf]
  %v114 = vld [vmem:[%s2 + $0x110] sm:$0xf]
  %v115 = vld [vmem:[%s2 + $0x114] sm:$0xf]
  %v116 = vld [vmem:[%s2 + $0x118] sm:$0xf]
  %v117 = vld [vmem:[%s2 + $0x11c] sm:$0xf]
  %v118 = vld [vmem:[%s2 + $0x120] sm:$0xf]
  %v119 = vld [vmem:[%s2 + $0x124] sm:$0xf]
  %v120 = vld [vmem:[%s2 + $0x128] sm:$0xf]
  %v121 = vld [vmem:[%s2 + $0x12c] sm:$0xf]
  %v122 = vld [vmem:[%s2 + $0x130] sm:$0xf]
  %v123 = vld [vmem:[%s2 + $0x134] sm:$0xf]
  %v124 = vld [vmem:[%s2 + $0x138] sm:$0xf]
  %v125 = vld [vmem:[%s2 + $0x13c] sm:$0xf]
  %v126 = vld [vmem:[%s2 + $0x140] sm:$0xf]
  %v127 = vld [vmem:[%s2 + $0x144] sm:$0xf]
  %v128 = vld [vmem:[%s2 + $0x148] sm:$0xf]
  %v129 = vld [vmem:[%s2 + $0x14c] sm:$0xf]
  %v130 = vld [vmem:[%s2 + $0x150] sm:$0xf]
  %v131 = vld [vmem:[%s2 + $0x154] sm:$0xf]
  %v132 = vld [vmem:[%s2 + $0x158] sm:$0xf]
  %v133 = vld [vmem:[%s2 + $0x15c] sm:$0xf]
  %v134 = vld [vmem:[%s2 + $0x160] sm:$0xf]
  %v135 = vld [vmem:[%s2 + $0x164] sm:$0xf]
  %v136 = vld [vmem:[%s2 + $0x168] sm:$0xf]
  %v137 = vld [vmem:[%s2 + $0x16c] sm:$0xf]
  %v138 = vld [vmem:[%s2 + $0x170] sm:$0xf]
  %v139 = vld [vmem:[%s2 + $0x174] sm:$0xf]
  %v140 = vld [vmem:[%s2 + $0x178] sm:$0xf]
  %v141 = vld [vmem:[%s2 + $0x17c] sm:$0xf]
  %v142 = vld [vmem:[%s2 + $0x180] sm:$0xf]
  %v143 = vld [vmem:[%s2 + $0x184] sm:$0xf]
  %v144 = vld [vmem:[%s2 + $0x188] sm:$0xf]
  %v145 = vld [vmem:[%s2 + $0x18c] sm:$0xf]
  %v146 = vld [vmem:[%s2 + $0x190] sm:$0xf]
  %v147 = vld [vmem:[%s2 + $0x194] sm:$0xf]
  %v148 = vld [vmem:[%s2 + $0x198] sm:$0xf]
  %v149 = vld [vmem:[%s2 + $0x19c] sm:$0xf]
  %v150 = vld [vmem:[%s2 + $0x1a0] sm:$0xf]
  %v151 = vld [vmem:[%s2 + $0x1a4] sm:$0xf]
  %v152 = vld [vmem:[%s2 + $0x1a8] sm:$0xf]
  %v153 = vld [vmem:[%s2 + $0x1ac] sm:$0xf]
  %v154 = vld [vmem:[%s2 + $0x1b0] sm:$0xf]
  %v155 = vld [vmem:[%s2 + $0x1b4] sm:$0xf]
  %v156 = vld [vmem:[%s2 + $0x1b8] sm:$0xf]
  %v157 = vld [vmem:[%s2 + $0x1bc] sm:$0xf]
  %v158 = vld [vmem:[%s2 + $0x1c0] sm:$0xf]
  %v159 = vld [vmem:[%s2 + $0x1c4] sm:$0xf]
  %v160 = vld [vmem:[%s2 + $0x1c8] sm:$0xf]
  %v161 = vld [vmem:[%s2 + $0x1cc] sm:$0xf]
  %v162 = vld [vmem:[%s2 + $0x1d0] sm:$0xf]
  %v163 = vld [vmem:[%s2 + $0x1d4] sm:$0xf]
  %v164 = vld [vmem:[%s2 + $0x1d8] sm:$0xf]
  %v165 = vld [vmem:[%s2 + $0x1dc] sm:$0xf]
  %v166 = vld [vmem:[%s2 + $0x1e0] sm:$0xf]
  %v167 = vld [vmem:[%s2 + $0x1e4] sm:$0xf]
  %v168 = vld [vmem:[%s2 + $0x1e8] sm:$0xf]
  %v169 = vld [vmem:[%s2 + $0x1ec] sm:$0xf]
  %v170 = vld [vmem:[%s2 + $0x1f0] sm:$0xf]
  %v171 = vld [vmem:[%s2 + $0x1f4] sm:$0xf]
  %v172 = vld [vmem:[%s2 + $0x1f8] sm:$0xf]
  %v173 = vld [vmem:[%s2 + $0x1fc] sm:$0xf]
  %v174 = vld [vmem:[%s7] sm:$0x1]
  %v176 = vlaneseq
  %v177 = vshrl.u32 %v176, 7
  %v178 = vsub.s32 0, %v177
  %v179 = vrot.slane %v174, %v178
  %v309 = vunpack.c.l.b16 %v46
  %v310 = vunpack.c.l.b16 %v47
  %v311 = vunpack.c.l.b16 %v48
  %v312 = vunpack.c.l.b16 %v49
  %v313 = vunpack.c.l.b16 %v50
  %v314 = vunpack.c.l.b16 %v51
  %v315 = vunpack.c.l.b16 %v52
  %v316 = vunpack.c.l.b16 %v53
  %v317 = vunpack.c.l.b16 %v54
  %v318 = vunpack.c.l.b16 %v55
  %v319 = vunpack.c.l.b16 %v56
  %v320 = vunpack.c.l.b16 %v57
  %v321 = vunpack.c.l.b16 %v58
  %v322 = vunpack.c.l.b16 %v59
  %v323 = vunpack.c.l.b16 %v60
  %v324 = vunpack.c.l.b16 %v61
  %v325 = vunpack.c.l.b16 %v62
  %v326 = vunpack.c.l.b16 %v63
  %v327 = vunpack.c.l.b16 %v64
  %v328 = vunpack.c.l.b16 %v65
  %v329 = vunpack.c.l.b16 %v66
  %v330 = vunpack.c.l.b16 %v67
  %v331 = vunpack.c.l.b16 %v68
  %v332 = vunpack.c.l.b16 %v69
  %v333 = vunpack.c.l.b16 %v70
  %v334 = vunpack.c.l.b16 %v71
  %v335 = vunpack.c.l.b16 %v72
  %v336 = vunpack.c.l.b16 %v73
  %v337 = vunpack.c.l.b16 %v74
  %v338 = vunpack.c.l.b16 %v75
  %v339 = vunpack.c.l.b16 %v76
  %v340 = vunpack.c.l.b16 %v77
  %v341 = vunpack.c.l.b16 %v78
  %v342 = vunpack.c.l.b16 %v79
  %v343 = vunpack.c.l.b16 %v80
  %v344 = vunpack.c.l.b16 %v81
  %v345 = vunpack.c.l.b16 %v82
  %v346 = vunpack.c.l.b16 %v83
  %v347 = vunpack.c.l.b16 %v84
  %v348 = vunpack.c.l.b16 %v85
  %v349 = vunpack.c.l.b16 %v86
  %v350 = vunpack.c.l.b16 %v87
  %v351 = vunpack.c.l.b16 %v88
  %v352 = vunpack.c.l.b16 %v89
  %v353 = vunpack.c.l.b16 %v90
  %v354 = vunpack.c.l.b16 %v91
  %v355 = vunpack.c.l.b16 %v92
  %v356 = vunpack.c.l.b16 %v93
  %v357 = vunpack.c.l.b16 %v94
  %v358 = vunpack.c.l.b16 %v95
  %v359 = vunpack.c.l.b16 %v96
  %v360 = vunpack.c.l.b16 %v97
  %v361 = vunpack.c.l.b16 %v98
  %v362 = vunpack.c.l.b16 %v99
  %v363 = vunpack.c.l.b16 %v100
  %v364 = vunpack.c.l.b16 %v101
  %v365 = vunpack.c.l.b16 %v102
  %v366 = vunpack.c.l.b16 %v103
  %v367 = vunpack.c.l.b16 %v104
  %v368 = vunpack.c.l.b16 %v105
  %v369 = vunpack.c.l.b16 %v106
  %v370 = vunpack.c.l.b16 %v107
  %v371 = vunpack.c.l.b16 %v108
  %v372 = vunpack.c.l.b16 %v109
  %v373 = vunpack.c.l.b16 %v110
  %v374 = vunpack.c.l.b16 %v111
  %v375 = vunpack.c.l.b16 %v112
  %v376 = vunpack.c.l.b16 %v113
  %v377 = vunpack.c.l.b16 %v114
  %v378 = vunpack.c.l.b16 %v115
  %v379 = vunpack.c.l.b16 %v116
  %v380 = vunpack.c.l.b16 %v117
  %v381 = vunpack.c.l.b16 %v118
  %v382 = vunpack.c.l.b16 %v119
  %v383 = vunpack.c.l.b16 %v120
  %v384 = vunpack.c.l.b16 %v121
  %v385 = vunpack.c.l.b16 %v122
  %v386 = vunpack.c.l.b16 %v123
  %v387 = vunpack.c.l.b16 %v124
  %v388 = vunpack.c.l.b16 %v125
  %v389 = vunpack.c.l.b16 %v126
  %v390 = vunpack.c.l.b16 %v127
  %v391 = vunpack.c.l.b16 %v128
  %v392 = vunpack.c.l.b16 %v129
  %v393 = vunpack.c.l.b16 %v130
  %v394 = vunpack.c.l.b16 %v131
  %v395 = vunpack.c.l.b16 %v132
  %v396 = vunpack.c.l.b16 %v133
  %v397 = vunpack.c.l.b16 %v134
  %v398 = vunpack.c.l.b16 %v135
  %v399 = vunpack.c.l.b16 %v136
  %v400 = vunpack.c.l.b16 %v137
  %v401 = vunpack.c.l.b16 %v138
  %v402 = vunpack.c.l.b16 %v139
  %v403 = vunpack.c.l.b16 %v140
  %v404 = vunpack.c.l.b16 %v141
  %v405 = vunpack.c.l.b16 %v142
  %v406 = vunpack.c.l.b16 %v143
  %v407 = vunpack.c.l.b16 %v144
  %v408 = vunpack.c.l.b16 %v145
  %v409 = vunpack.c.l.b16 %v146
  %v410 = vunpack.c.l.b16 %v147
  %v411 = vunpack.c.l.b16 %v148
  %v412 = vunpack.c.l.b16 %v149
  %v413 = vunpack.c.l.b16 %v150
  %v414 = vunpack.c.l.b16 %v151
  %v415 = vunpack.c.l.b16 %v152
  %v416 = vunpack.c.l.b16 %v153
  %v417 = vunpack.c.l.b16 %v154
  %v418 = vunpack.c.l.b16 %v155
  %v419 = vunpack.c.l.b16 %v156
  %v420 = vunpack.c.l.b16 %v157
  %v421 = vunpack.c.l.b16 %v158
  %v422 = vunpack.c.l.b16 %v159
  %v423 = vunpack.c.l.b16 %v160
  %v424 = vunpack.c.l.b16 %v161
  %v425 = vunpack.c.l.b16 %v162
  %v426 = vunpack.c.l.b16 %v163
  %v427 = vunpack.c.l.b16 %v164
  %v428 = vunpack.c.l.b16 %v165
  %v429 = vunpack.c.l.b16 %v166
  %v430 = vunpack.c.l.b16 %v167
  %v431 = vunpack.c.l.b16 %v168
  %v432 = vunpack.c.l.b16 %v169
  %v433 = vunpack.c.l.b16 %v170
  %v434 = vunpack.c.l.b16 %v171
  %v435 = vunpack.c.l.b16 %v172
  %v436 = vunpack.c.l.b16 %v173
  %v437 = vpack.c.b16 %v310, %v309
  %v438 = vpack.c.b16 %v312, %v311
  %v439 = vpack.c.b16 %v314, %v313
  %v440 = vpack.c.b16 %v316, %v315
  %v441 = vpack.c.b16 %v318, %v317
  %v442 = vpack.c.b16 %v320, %v319
  %v443 = vpack.c.b16 %v322, %v321
  %v444 = vpack.c.b16 %v324, %v323
  %v445 = vpack.c.b16 %v326, %v325
  %v446 = vpack.c.b16 %v328, %v327
  %v447 = vpack.c.b16 %v330, %v329
  %v448 = vpack.c.b16 %v332, %v331
  %v449 = vpack.c.b16 %v334, %v333
  %v450 = vpack.c.b16 %v336, %v335
  %v451 = vpack.c.b16 %v338, %v337
  %v452 = vpack.c.b16 %v340, %v339
  %v453 = vpack.c.b16 %v342, %v341
  %v454 = vpack.c.b16 %v344, %v343
  %v455 = vpack.c.b16 %v346, %v345
  %v456 = vpack.c.b16 %v348, %v347
  %v457 = vpack.c.b16 %v350, %v349
  %v458 = vpack.c.b16 %v352, %v351
  %v459 = vpack.c.b16 %v354, %v353
  %v460 = vpack.c.b16 %v356, %v355
  %v461 = vpack.c.b16 %v358, %v357
  %v462 = vpack.c.b16 %v360, %v359
  %v463 = vpack.c.b16 %v362, %v361
  %v464 = vpack.c.b16 %v364, %v363
  %v465 = vpack.c.b16 %v366, %v365
  %v466 = vpack.c.b16 %v368, %v367
  %v467 = vpack.c.b16 %v370, %v369
  %v468 = vpack.c.b16 %v372, %v371
  %v469 = vpack.c.b16 %v374, %v373
  %v470 = vpack.c.b16 %v376, %v375
  %v471 = vpack.c.b16 %v378, %v377
  %v472 = vpack.c.b16 %v380, %v379
  %v473 = vpack.c.b16 %v382, %v381
  %v474 = vpack.c.b16 %v384, %v383
  %v475 = vpack.c.b16 %v386, %v385
  %v476 = vpack.c.b16 %v388, %v387
  %v477 = vpack.c.b16 %v390, %v389
  %v478 = vpack.c.b16 %v392, %v391
  %v479 = vpack.c.b16 %v394, %v393
  %v480 = vpack.c.b16 %v396, %v395
  %v481 = vpack.c.b16 %v398, %v397
  %v482 = vpack.c.b16 %v400, %v399
  %v483 = vpack.c.b16 %v402, %v401
  %v484 = vpack.c.b16 %v404, %v403
  %v485 = vpack.c.b16 %v406, %v405
  %v486 = vpack.c.b16 %v408, %v407
  %v487 = vpack.c.b16 %v410, %v409
  %v488 = vpack.c.b16 %v412, %v411
  %v489 = vpack.c.b16 %v414, %v413
  %v490 = vpack.c.b16 %v416, %v415
  %v491 = vpack.c.b16 %v418, %v417
  %v492 = vpack.c.b16 %v420, %v419
  %v493 = vpack.c.b16 %v422, %v421
  %v494 = vpack.c.b16 %v424, %v423
  %v495 = vpack.c.b16 %v426, %v425
  %v496 = vpack.c.b16 %v428, %v427
  %v497 = vpack.c.b16 %v430, %v429
  %v498 = vpack.c.b16 %v432, %v431
  %v499 = vpack.c.b16 %v434, %v433
  %v500 = vpack.c.b16 %v436, %v435
  %565 = vmatprep.subr.bf16.mxu0 0
  %566 = vmatpush1.bf16.msra.mxu0 %v444
  %567 = vmatprep.subr.bf16.mxu0 0
  %568 = vmatpush1.bf16.msra.mxu0 %v443
  %569 = vmatprep.subr.bf16.mxu0 0
  %570 = vmatpush1.bf16.msra.mxu0 %v442
  %571 = vmatprep.subr.bf16.mxu0 0
  %572 = vmatpush1.bf16.msra.mxu0 %v441
  %573 = vmatprep.subr.bf16.mxu0 0
  %574 = vmatpush1.bf16.msra.mxu0 %v440
  %575 = vmatprep.subr.bf16.mxu0 0
  %576 = vmatpush1.bf16.msra.mxu0 %v439
  %577 = vmatprep.subr.bf16.mxu0 0
  %578 = vmatpush1.bf16.msra.mxu0 %v438
  %579 = vmatprep.subr.bf16.mxu0 0
  %580 = vmatpush1.bf16.msra.mxu0 %v437
  %581 = vmatprep.subr.bf16.mxu0 0
  %582 = vmatpush2.bf16.msra.mxu0 %v452
  %583 = vmatprep.subr.bf16.mxu0 0
  %584 = vmatpush2.bf16.msra.mxu0 %v451
  %585 = vmatprep.subr.bf16.mxu0 0
  %586 = vmatpush2.bf16.msra.mxu0 %v450
  %587 = vmatprep.subr.bf16.mxu0 0
  %588 = vmatpush2.bf16.msra.mxu0 %v449
  %589 = vmatprep.subr.bf16.mxu0 0
  %590 = vmatpush2.bf16.msra.mxu0 %v448
  %591 = vmatprep.subr.bf16.mxu0 0
  %592 = vmatpush2.bf16.msra.mxu0 %v447
  %593 = vmatprep.subr.bf16.mxu0 0
  %594 = vmatpush2.bf16.msra.mxu0 %v446
  %595 = vmatprep.subr.bf16.mxu0 0
  %596 = vmatpush2.bf16.msra.mxu0 %v445
  %597 = vmatprep.mubr.bf16.mxu0 %v39
  %598 = vmatmul.mubr.bf16.gmra.mxu0 %v38
  %v599 = vpop.f32.mrf.mxu0
  %v600 = vadd.f32 %v179, %v599
  %v601 = vpop.f32.mrf.mxu0
  %v602 = vpop.f32.mrf.mxu0
  %v603 = vpop.f32.mrf.mxu0
  %604 = vdwg.mxu0
  %605 = vmatprep.subr.bf16.mxu0 0
  %606 = vmatpush1.bf16.msra.mxu0 %v460
  %607 = vmatprep.subr.bf16.mxu0 0
  %608 = vmatpush1.bf16.msra.mxu0 %v459
  %609 = vmatprep.subr.bf16.mxu0 0
  %610 = vmatpush1.bf16.msra.mxu0 %v458
  %611 = vmatprep.subr.bf16.mxu0 0
  %612 = vmatpush1.bf16.msra.mxu0 %v457
  %613 = vmatprep.subr.bf16.mxu0 0
  %614 = vmatpush1.bf16.msra.mxu0 %v456
  %615 = vmatprep.subr.bf16.mxu0 0
  %616 = vmatpush1.bf16.msra.mxu0 %v455
  %617 = vmatprep.subr.bf16.mxu0 0
  %618 = vmatpush1.bf16.msra.mxu0 %v454
  %619 = vmatprep.subr.bf16.mxu0 0
  %620 = vmatpush1.bf16.msra.mxu0 %v453
  %621 = vmatprep.subr.bf16.mxu0 0
  %622 = vmatpush2.bf16.msra.mxu0 %v468
  %623 = vmatprep.subr.bf16.mxu0 0
  %624 = vmatpush2.bf16.msra.mxu0 %v467
  %625 = vmatprep.subr.bf16.mxu0 0
  %626 = vmatpush2.bf16.msra.mxu0 %v466
  %627 = vmatprep.subr.bf16.mxu0 0
  %628 = vmatpush2.bf16.msra.mxu0 %v465
  %629 = vmatprep.subr.bf16.mxu0 0
  %630 = vmatpush2.bf16.msra.mxu0 %v464
  %631 = vmatprep.subr.bf16.mxu0 0
  %632 = vmatpush2.bf16.msra.mxu0 %v463
  %633 = vmatprep.subr.bf16.mxu0 0
  %634 = vmatpush2.bf16.msra.mxu0 %v462
  %635 = vmatprep.subr.bf16.mxu0 0
  %636 = vmatpush2.bf16.msra.mxu0 %v461
  %637 = vmatprep.mubr.bf16.mxu0 %v41
  %638 = vmatmul.mubr.bf16.gmra.mxu0 %v40
  %v639 = vpop.f32.mrf.mxu0
  %v640 = vadd.f32 %v600, %v639
  %v641 = vpop.f32.mrf.mxu0
  %v642 = vpop.f32.mrf.mxu0
  %v643 = vpop.f32.mrf.mxu0
  %644 = vdwg.mxu0
  %645 = vmatprep.subr.bf16.mxu0 0
  %646 = vmatpush1.bf16.msra.mxu0 %v476
  %647 = vmatprep.subr.bf16.mxu0 0
  %648 = vmatpush1.bf16.msra.mxu0 %v475
  %649 = vmatprep.subr.bf16.mxu0 0
  %650 = vmatpush1.bf16.msra.mxu0 %v474
  %651 = vmatprep.subr.bf16.mxu0 0
  %652 = vmatpush1.bf16.msra.mxu0 %v473
  %653 = vmatprep.subr.bf16.mxu0 0
  %654 = vmatpush1.bf16.msra.mxu0 %v472
  %655 = vmatprep.subr.bf16.mxu0 0
  %656 = vmatpush1.bf16.msra.mxu0 %v471
  %657 = vmatprep.subr.bf16.mxu0 0
  %658 = vmatpush1.bf16.msra.mxu0 %v470
  %659 = vmatprep.subr.bf16.mxu0 0
  %660 = vmatpush1.bf16.msra.mxu0 %v469
  %661 = vmatprep.subr.bf16.mxu0 0
  %662 = vmatpush2.bf16.msra.mxu0 %v484
  %663 = vmatprep.subr.bf16.mxu0 0
  %664 = vmatpush2.bf16.msra.mxu0 %v483
  %665 = vmatprep.subr.bf16.mxu0 0
  %666 = vmatpush2.bf16.msra.mxu0 %v482
  %667 = vmatprep.subr.bf16.mxu0 0
  %668 = vmatpush2.bf16.msra.mxu0 %v481
  %669 = vmatprep.subr.bf16.mxu0 0
  %670 = vmatpush2.bf16.msra.mxu0 %v480
  %671 = vmatprep.subr.bf16.mxu0 0
  %672 = vmatpush2.bf16.msra.mxu0 %v479
  %673 = vmatprep.subr.bf16.mxu0 0
  %674 = vmatpush2.bf16.msra.mxu0 %v478
  %675 = vmatprep.subr.bf16.mxu0 0
  %676 = vmatpush2.bf16.msra.mxu0 %v477
  %677 = vmatprep.mubr.bf16.mxu0 %v43
  %678 = vmatmul.mubr.bf16.gmra.mxu0 %v42
  %v679 = vpop.f32.mrf.mxu0
  %v680 = vadd.f32 %v640, %v679
  %v681 = vpop.f32.mrf.mxu0
  %v682 = vpop.f32.mrf.mxu0
  %v683 = vpop.f32.mrf.mxu0
  %684 = vdwg.mxu0
  %685 = vmatprep.subr.bf16.mxu0 0
  %686 = vmatpush1.bf16.msra.mxu0 %v492
  %687 = vmatprep.subr.bf16.mxu0 0
  %688 = vmatpush1.bf16.msra.mxu0 %v491
  %689 = vmatprep.subr.bf16.mxu0 0
  %690 = vmatpush1.bf16.msra.mxu0 %v490
  %691 = vmatprep.subr.bf16.mxu0 0
  %692 = vmatpush1.bf16.msra.mxu0 %v489
  %693 = vmatprep.subr.bf16.mxu0 0
  %694 = vmatpush1.bf16.msra.mxu0 %v488
  %695 = vmatprep.subr.bf16.mxu0 0
  %696 = vmatpush1.bf16.msra.mxu0 %v487
  %697 = vmatprep.subr.bf16.mxu0 0
  %698 = vmatpush1.bf16.msra.mxu0 %v486
  %699 = vmatprep.subr.bf16.mxu0 0
  %700 = vmatpush1.bf16.msra.mxu0 %v485
  %701 = vmatprep.subr.bf16.mxu0 0
  %702 = vmatpush2.bf16.msra.mxu0 %v500
  %703 = vmatprep.subr.bf16.mxu0 0
  %704 = vmatpush2.bf16.msra.mxu0 %v499
  %705 = vmatprep.subr.bf16.mxu0 0
  %706 = vmatpush2.bf16.msra.mxu0 %v498
  %707 = vmatprep.subr.bf16.mxu0 0
  %708 = vmatpush2.bf16.msra.mxu0 %v497
  %709 = vmatprep.subr.bf16.mxu0 0
  %710 = vmatpush2.bf16.msra.mxu0 %v496
  %711 = vmatprep.subr.bf16.mxu0 0
  %712 = vmatpush2.bf16.msra.mxu0 %v495
  %713 = vmatprep.subr.bf16.mxu0 0
  %714 = vmatpush2.bf16.msra.mxu0 %v494
  %715 = vmatprep.subr.bf16.mxu0 0
  %716 = vmatpush2.bf16.msra.mxu0 %v493
  %717 = vmatprep.mubr.bf16.mxu0 %v45
  %718 = vmatmul.mubr.bf16.gmra.mxu0 %v44
  %v719 = vpop.f32.mrf.mxu0
  %v720 = vadd.f32 %v680, %v719
  %v721 = vpop.f32.mrf.mxu0
  %v722 = vpop.f32.mrf.mxu0
  %v723 = vpop.f32.mrf.mxu0
  %724 = vdwg.mxu0
  %vm725 = vcmp.gt.f32.partialorder %v720, 0.0
  %v726 = vmul.f32 %v720, 0.05
  %v727 = vsel %vm725, %v720, %v726
  %v728 = vpack.c.bf16 %v727, %v727
  %v729 = vld [vmem:[%s3] sm:$0xff]
  %v730 = vld [vmem:[%s3 + $0x8] sm:$0xff]
  %v731 = vld [vmem:[%s3 + $0x10] sm:$0xff]
  %v732 = vld [vmem:[%s3 + $0x18] sm:$0xff]
  %v733 = vld [vmem:[%s3 + $0x20] sm:$0xff]
  %v734 = vld [vmem:[%s3 + $0x28] sm:$0xff]
  %v735 = vld [vmem:[%s3 + $0x30] sm:$0xff]
  %v736 = vld [vmem:[%s3 + $0x38] sm:$0xff]
  %v737 = vld [vmem:[%s3 + $0x40] sm:$0xff]
  %v738 = vld [vmem:[%s3 + $0x48] sm:$0xff]
  %v739 = vld [vmem:[%s3 + $0x50] sm:$0xff]
  %v740 = vld [vmem:[%s3 + $0x58] sm:$0xff]
  %v741 = vld [vmem:[%s3 + $0x60] sm:$0xff]
  %v742 = vld [vmem:[%s3 + $0x68] sm:$0xff]
  %v743 = vld [vmem:[%s3 + $0x70] sm:$0xff]
  %v744 = vld [vmem:[%s3 + $0x78] sm:$0xff]
  %v745 = vld [vmem:[%s7 + $0x1] sm:$0x3]
  %v747 = vlaneseq
  %v748 = vshrl.u32 %v747, 7
  %v749 = vsub.s32 0, %v748
  %v750 = vrot.slane %v745, %v749
  %v751 = vlaneseq
  %v752 = vshrl.u32 %v751, 7
  %v753 = vsub.s32 1, %v752
  %v754 = vrot.slane %v745, %v753
  %v773 = vunpack.c.l.b16 %v729
  %v774 = vunpack.c.h.b16 %v729
  %v775 = vunpack.c.l.b16 %v730
  %v776 = vunpack.c.h.b16 %v730
  %v777 = vunpack.c.l.b16 %v731
  %v778 = vunpack.c.h.b16 %v731
  %v779 = vunpack.c.l.b16 %v732
  %v780 = vunpack.c.h.b16 %v732
  %v781 = vunpack.c.l.b16 %v733
  %v782 = vunpack.c.h.b16 %v733
  %v783 = vunpack.c.l.b16 %v734
  %v784 = vunpack.c.h.b16 %v734
  %v785 = vunpack.c.l.b16 %v735
  %v786 = vunpack.c.h.b16 %v735
  %v787 = vunpack.c.l.b16 %v736
  %v788 = vunpack.c.h.b16 %v736
  %v789 = vunpack.c.l.b16 %v737
  %v790 = vunpack.c.h.b16 %v737
  %v791 = vunpack.c.l.b16 %v738
  %v792 = vunpack.c.h.b16 %v738
  %v793 = vunpack.c.l.b16 %v739
  %v794 = vunpack.c.h.b16 %v739
  %v795 = vunpack.c.l.b16 %v740
  %v796 = vunpack.c.h.b16 %v740
  %v797 = vunpack.c.l.b16 %v741
  %v798 = vunpack.c.h.b16 %v741
  %v799 = vunpack.c.l.b16 %v742
  %v800 = vunpack.c.h.b16 %v742
  %v801 = vunpack.c.l.b16 %v743
  %v802 = vunpack.c.h.b16 %v743
  %v803 = vunpack.c.l.b16 %v744
  %v804 = vunpack.c.h.b16 %v744
  %v805 = vpack.c.b16 %v775, %v773
  %v806 = vpack.c.b16 %v776, %v774
  %v807 = vpack.c.b16 %v779, %v777
  %v808 = vpack.c.b16 %v780, %v778
  %v809 = vpack.c.b16 %v783, %v781
  %v810 = vpack.c.b16 %v784, %v782
  %v811 = vpack.c.b16 %v787, %v785
  %v812 = vpack.c.b16 %v788, %v786
  %v813 = vpack.c.b16 %v791, %v789
  %v814 = vpack.c.b16 %v792, %v790
  %v815 = vpack.c.b16 %v795, %v793
  %v816 = vpack.c.b16 %v796, %v794
  %v817 = vpack.c.b16 %v799, %v797
  %v818 = vpack.c.b16 %v800, %v798
  %v819 = vpack.c.b16 %v803, %v801
  %v820 = vpack.c.b16 %v804, %v802
  %837 = vmatprep.subr.bf16.mxu0 %v820
  %838 = vmatpush1.bf16.msra.mxu0 %v819
  %839 = vmatprep.subr.bf16.mxu0 %v818
  %840 = vmatpush1.bf16.msra.mxu0 %v817
  %841 = vmatprep.subr.bf16.mxu0 %v816
  %842 = vmatpush1.bf16.msra.mxu0 %v815
  %843 = vmatprep.subr.bf16.mxu0 %v814
  %844 = vmatpush1.bf16.msra.mxu0 %v813
  %845 = vmatprep.subr.bf16.mxu0 %v812
  %846 = vmatpush1.bf16.msra.mxu0 %v811
  %847 = vmatprep.subr.bf16.mxu0 %v810
  %848 = vmatpush1.bf16.msra.mxu0 %v809
  %849 = vmatprep.subr.bf16.mxu0 %v808
  %850 = vmatpush1.bf16.msra.mxu0 %v807
  %851 = vmatprep.subr.bf16.mxu0 %v806
  %852 = vmatpush1.bf16.msra.mxu0 %v805
  %853 = vmatprep.subr.bf16.mxu0 0
  %854 = vmatpush2.bf16.msra.mxu0 0
  %855 = vmatprep.subr.bf16.mxu0 0
  %856 = vmatpush2.bf16.msra.mxu0 0
  %857 = vmatprep.subr.bf16.mxu0 0
  %858 = vmatpush2.bf16.msra.mxu0 0
  %859 = vmatprep.subr.bf16.mxu0 0
  %860 = vmatpush2.bf16.msra.mxu0 0
  %861 = vmatprep.subr.bf16.mxu0 0
  %862 = vmatpush2.bf16.msra.mxu0 0
  %863 = vmatprep.subr.bf16.mxu0 0
  %864 = vmatpush2.bf16.msra.mxu0 0
  %865 = vmatprep.subr.bf16.mxu0 0
  %866 = vmatpush2.bf16.msra.mxu0 0
  %867 = vmatprep.subr.bf16.mxu0 0
  %868 = vmatpush2.bf16.msra.mxu0 0
  %869 = vmatprep.mubr.bf16.mxu0 0
  %870 = vmatmul.mubr.bf16.gmra.mxu0 %v728
  %v871 = vpop.f32.mrf.mxu0
  %v872 = vadd.f32 %v750, %v871
  %v873 = vpop.f32.mrf.mxu0
  %v874 = vadd.f32 %v754, %v873
  %v875 = vpop.f32.mrf.mxu0
  %v876 = vpop.f32.mrf.mxu0
  %877 = vdwg.mxu0
  %v878 = vmul.f32 %v874, 0.5
  %v879 = vmul.f32 %v878, 1.442695
  %v880 = vpow.pop %v879
  %v881 = vld [vmem:[%s1] sm:$0xff]
  %v882 = vmul.f32 %v880, %v881
  %v883 = vadd.f32 %v872, %v882
  %v884 = vpack.c.bf16 %v883, %v883
  %v885 = vld [vmem:[%s4] sm:$0xf]
  %v886 = vld [vmem:[%s4 + $0x4] sm:$0xf]
  %v887 = vld [vmem:[%s4 + $0x8] sm:$0xf]
  %v888 = vld [vmem:[%s4 + $0xc] sm:$0xf]
  %v889 = vld [vmem:[%s4 + $0x10] sm:$0xf]
  %v890 = vld [vmem:[%s4 + $0x14] sm:$0xf]
  %v891 = vld [vmem:[%s4 + $0x18] sm:$0xf]
  %v892 = vld [vmem:[%s4 + $0x1c] sm:$0xf]
  %v893 = vld [vmem:[%s4 + $0x20] sm:$0xf]
  %v894 = vld [vmem:[%s4 + $0x24] sm:$0xf]
  %v895 = vld [vmem:[%s4 + $0x28] sm:$0xf]
  %v896 = vld [vmem:[%s4 + $0x2c] sm:$0xf]
  %v897 = vld [vmem:[%s4 + $0x30] sm:$0xf]
  %v898 = vld [vmem:[%s4 + $0x34] sm:$0xf]
  %v899 = vld [vmem:[%s4 + $0x38] sm:$0xf]
  %v900 = vld [vmem:[%s4 + $0x3c] sm:$0xf]
  %v901 = vld [vmem:[%s7 + $0x3] sm:$0x1]
  %v903 = vlaneseq
  %v904 = vshrl.u32 %v903, 7
  %v905 = vsub.s32 0, %v904
  %v906 = vrot.slane %v901, %v905
  %v924 = vunpack.c.l.b16 %v885
  %v925 = vunpack.c.l.b16 %v886
  %v926 = vunpack.c.l.b16 %v887
  %v927 = vunpack.c.l.b16 %v888
  %v928 = vunpack.c.l.b16 %v889
  %v929 = vunpack.c.l.b16 %v890
  %v930 = vunpack.c.l.b16 %v891
  %v931 = vunpack.c.l.b16 %v892
  %v932 = vunpack.c.l.b16 %v893
  %v933 = vunpack.c.l.b16 %v894
  %v934 = vunpack.c.l.b16 %v895
  %v935 = vunpack.c.l.b16 %v896
  %v936 = vunpack.c.l.b16 %v897
  %v937 = vunpack.c.l.b16 %v898
  %v938 = vunpack.c.l.b16 %v899
  %v939 = vunpack.c.l.b16 %v900
  %v940 = vpack.c.b16 %v925, %v924
  %v941 = vpack.c.b16 %v927, %v926
  %v942 = vpack.c.b16 %v929, %v928
  %v943 = vpack.c.b16 %v931, %v930
  %v944 = vpack.c.b16 %v933, %v932
  %v945 = vpack.c.b16 %v935, %v934
  %v946 = vpack.c.b16 %v937, %v936
  %v947 = vpack.c.b16 %v939, %v938
  %956 = vmatprep.subr.bf16.mxu0 0
  %957 = vmatpush1.bf16.msra.mxu0 %v947
  %958 = vmatprep.subr.bf16.mxu0 0
  %959 = vmatpush1.bf16.msra.mxu0 %v946
  %960 = vmatprep.subr.bf16.mxu0 0
  %961 = vmatpush1.bf16.msra.mxu0 %v945
  %962 = vmatprep.subr.bf16.mxu0 0
  %963 = vmatpush1.bf16.msra.mxu0 %v944
  %964 = vmatprep.subr.bf16.mxu0 0
  %965 = vmatpush1.bf16.msra.mxu0 %v943
  %966 = vmatprep.subr.bf16.mxu0 0
  %967 = vmatpush1.bf16.msra.mxu0 %v942
  %968 = vmatprep.subr.bf16.mxu0 0
  %969 = vmatpush1.bf16.msra.mxu0 %v941
  %970 = vmatprep.subr.bf16.mxu0 0
  %971 = vmatpush1.bf16.msra.mxu0 %v940
  %972 = vmatprep.subr.bf16.mxu0 0
  %973 = vmatpush2.bf16.msra.mxu0 0
  %974 = vmatprep.subr.bf16.mxu0 0
  %975 = vmatpush2.bf16.msra.mxu0 0
  %976 = vmatprep.subr.bf16.mxu0 0
  %977 = vmatpush2.bf16.msra.mxu0 0
  %978 = vmatprep.subr.bf16.mxu0 0
  %979 = vmatpush2.bf16.msra.mxu0 0
  %980 = vmatprep.subr.bf16.mxu0 0
  %981 = vmatpush2.bf16.msra.mxu0 0
  %982 = vmatprep.subr.bf16.mxu0 0
  %983 = vmatpush2.bf16.msra.mxu0 0
  %984 = vmatprep.subr.bf16.mxu0 0
  %985 = vmatpush2.bf16.msra.mxu0 0
  %986 = vmatprep.subr.bf16.mxu0 0
  %987 = vmatpush2.bf16.msra.mxu0 0
  %988 = vmatprep.mubr.bf16.mxu0 0
  %989 = vmatmul.mubr.bf16.gmra.mxu0 %v884
  %v990 = vpop.f32.mrf.mxu0
  %v991 = vadd.f32 %v906, %v990
  %v992 = vpop.f32.mrf.mxu0
  %v993 = vpop.f32.mrf.mxu0
  %v994 = vpop.f32.mrf.mxu0
  %995 = vdwg.mxu0
  %vm996 = vcmp.gt.f32.partialorder %v991, 0.0
  %v997 = vmul.f32 %v991, 0.05
  %v998 = vsel %vm996, %v991, %v997
  %v999 = vpack.c.bf16 %v998, %v998
  %v1000 = vld [vmem:[%s5] sm:$0xf]
  %v1001 = vld [vmem:[%s5 + $0x4] sm:$0xf]
  %v1002 = vld [vmem:[%s5 + $0x8] sm:$0xf]
  %v1003 = vld [vmem:[%s5 + $0xc] sm:$0xf]
  %v1004 = vld [vmem:[%s5 + $0x10] sm:$0xf]
  %v1005 = vld [vmem:[%s5 + $0x14] sm:$0xf]
  %v1006 = vld [vmem:[%s5 + $0x18] sm:$0xf]
  %v1007 = vld [vmem:[%s5 + $0x1c] sm:$0xf]
  %v1008 = vld [vmem:[%s5 + $0x20] sm:$0xf]
  %v1009 = vld [vmem:[%s5 + $0x24] sm:$0xf]
  %v1010 = vld [vmem:[%s5 + $0x28] sm:$0xf]
  %v1011 = vld [vmem:[%s5 + $0x2c] sm:$0xf]
  %v1012 = vld [vmem:[%s5 + $0x30] sm:$0xf]
  %v1013 = vld [vmem:[%s5 + $0x34] sm:$0xf]
  %v1014 = vld [vmem:[%s5 + $0x38] sm:$0xf]
  %v1015 = vld [vmem:[%s5 + $0x3c] sm:$0xf]
  %v1016 = vld [vmem:[%s7 + $0x4] sm:$0x1]
  %v1018 = vlaneseq
  %v1019 = vshrl.u32 %v1018, 7
  %v1020 = vsub.s32 0, %v1019
  %v1021 = vrot.slane %v1016, %v1020
  %v1039 = vunpack.c.l.b16 %v1000
  %v1040 = vunpack.c.l.b16 %v1001
  %v1041 = vunpack.c.l.b16 %v1002
  %v1042 = vunpack.c.l.b16 %v1003
  %v1043 = vunpack.c.l.b16 %v1004
  %v1044 = vunpack.c.l.b16 %v1005
  %v1045 = vunpack.c.l.b16 %v1006
  %v1046 = vunpack.c.l.b16 %v1007
  %v1047 = vunpack.c.l.b16 %v1008
  %v1048 = vunpack.c.l.b16 %v1009
  %v1049 = vunpack.c.l.b16 %v1010
  %v1050 = vunpack.c.l.b16 %v1011
  %v1051 = vunpack.c.l.b16 %v1012
  %v1052 = vunpack.c.l.b16 %v1013
  %v1053 = vunpack.c.l.b16 %v1014
  %v1054 = vunpack.c.l.b16 %v1015
  %v1055 = vpack.c.b16 %v1040, %v1039
  %v1056 = vpack.c.b16 %v1042, %v1041
  %v1057 = vpack.c.b16 %v1044, %v1043
  %v1058 = vpack.c.b16 %v1046, %v1045
  %v1059 = vpack.c.b16 %v1048, %v1047
  %v1060 = vpack.c.b16 %v1050, %v1049
  %v1061 = vpack.c.b16 %v1052, %v1051
  %v1062 = vpack.c.b16 %v1054, %v1053
  %1071 = vmatprep.subr.bf16.mxu0 0
  %1072 = vmatpush1.bf16.msra.mxu0 %v1062
  %1073 = vmatprep.subr.bf16.mxu0 0
  %1074 = vmatpush1.bf16.msra.mxu0 %v1061
  %1075 = vmatprep.subr.bf16.mxu0 0
  %1076 = vmatpush1.bf16.msra.mxu0 %v1060
  %1077 = vmatprep.subr.bf16.mxu0 0
  %1078 = vmatpush1.bf16.msra.mxu0 %v1059
  %1079 = vmatprep.subr.bf16.mxu0 0
  %1080 = vmatpush1.bf16.msra.mxu0 %v1058
  %1081 = vmatprep.subr.bf16.mxu0 0
  %1082 = vmatpush1.bf16.msra.mxu0 %v1057
  %1083 = vmatprep.subr.bf16.mxu0 0
  %1084 = vmatpush1.bf16.msra.mxu0 %v1056
  %1085 = vmatprep.subr.bf16.mxu0 0
  %1086 = vmatpush1.bf16.msra.mxu0 %v1055
  %1087 = vmatprep.subr.bf16.mxu0 0
  %1088 = vmatpush2.bf16.msra.mxu0 0
  %1089 = vmatprep.subr.bf16.mxu0 0
  %1090 = vmatpush2.bf16.msra.mxu0 0
  %1091 = vmatprep.subr.bf16.mxu0 0
  %1092 = vmatpush2.bf16.msra.mxu0 0
  %1093 = vmatprep.subr.bf16.mxu0 0
  %1094 = vmatpush2.bf16.msra.mxu0 0
  %1095 = vmatprep.subr.bf16.mxu0 0
  %1096 = vmatpush2.bf16.msra.mxu0 0
  %1097 = vmatprep.subr.bf16.mxu0 0
  %1098 = vmatpush2.bf16.msra.mxu0 0
  %1099 = vmatprep.subr.bf16.mxu0 0
  %1100 = vmatpush2.bf16.msra.mxu0 0
  %1101 = vmatprep.subr.bf16.mxu0 0
  %1102 = vmatpush2.bf16.msra.mxu0 0
  %1103 = vmatprep.mubr.bf16.mxu0 0
  %1104 = vmatmul.mubr.bf16.gmra.mxu0 %v999
  %v1105 = vpop.f32.mrf.mxu0
  %v1106 = vadd.f32 %v1021, %v1105
  %v1107 = vpop.f32.mrf.mxu0
  %v1108 = vpop.f32.mrf.mxu0
  %v1109 = vpop.f32.mrf.mxu0
  %1110 = vdwg.mxu0
  %vm1111 = vcmp.gt.f32.partialorder %v1106, 0.0
  %v1112 = vmul.f32 %v1106, 0.05
  %v1113 = vsel %vm1111, %v1106, %v1112
  %v1114 = vpack.c.bf16 %v1113, %v1113
  %v1115 = vld [vmem:[%s6] sm:$0xf]
  %v1116 = vld [vmem:[%s6 + $0x4] sm:$0xf]
  %v1117 = vld [vmem:[%s6 + $0x8] sm:$0xf]
  %v1118 = vld [vmem:[%s6 + $0xc] sm:$0xf]
  %v1119 = vld [vmem:[%s6 + $0x10] sm:$0xf]
  %v1120 = vld [vmem:[%s6 + $0x14] sm:$0xf]
  %v1121 = vld [vmem:[%s6 + $0x18] sm:$0xf]
  %v1122 = vld [vmem:[%s6 + $0x1c] sm:$0xf]
  %v1123 = vld [vmem:[%s6 + $0x20] sm:$0xf]
  %v1124 = vld [vmem:[%s6 + $0x24] sm:$0xf]
  %v1125 = vld [vmem:[%s6 + $0x28] sm:$0xf]
  %v1126 = vld [vmem:[%s6 + $0x2c] sm:$0xf]
  %v1127 = vld [vmem:[%s6 + $0x30] sm:$0xf]
  %v1128 = vld [vmem:[%s6 + $0x34] sm:$0xf]
  %v1129 = vld [vmem:[%s6 + $0x38] sm:$0xf]
  %v1130 = vld [vmem:[%s6 + $0x3c] sm:$0xf]
  %v1131 = vld [vmem:[%s7 + $0x5] sm:$0x1]
  %v1133 = vlaneseq
  %v1134 = vshrl.u32 %v1133, 7
  %v1135 = vsub.s32 0, %v1134
  %v1136 = vrot.slane %v1131, %v1135
  %v1154 = vunpack.c.l.b16 %v1115
  %v1155 = vunpack.c.l.b16 %v1116
  %v1156 = vunpack.c.l.b16 %v1117
  %v1157 = vunpack.c.l.b16 %v1118
  %v1158 = vunpack.c.l.b16 %v1119
  %v1159 = vunpack.c.l.b16 %v1120
  %v1160 = vunpack.c.l.b16 %v1121
  %v1161 = vunpack.c.l.b16 %v1122
  %v1162 = vunpack.c.l.b16 %v1123
  %v1163 = vunpack.c.l.b16 %v1124
  %v1164 = vunpack.c.l.b16 %v1125
  %v1165 = vunpack.c.l.b16 %v1126
  %v1166 = vunpack.c.l.b16 %v1127
  %v1167 = vunpack.c.l.b16 %v1128
  %v1168 = vunpack.c.l.b16 %v1129
  %v1169 = vunpack.c.l.b16 %v1130
  %v1170 = vpack.c.b16 %v1155, %v1154
  %v1171 = vpack.c.b16 %v1157, %v1156
  %v1172 = vpack.c.b16 %v1159, %v1158
  %v1173 = vpack.c.b16 %v1161, %v1160
  %v1174 = vpack.c.b16 %v1163, %v1162
  %v1175 = vpack.c.b16 %v1165, %v1164
  %v1176 = vpack.c.b16 %v1167, %v1166
  %v1177 = vpack.c.b16 %v1169, %v1168
  %1186 = vmatprep.subr.bf16.mxu0 0
  %1187 = vmatpush1.bf16.msra.mxu0 %v1177
  %1188 = vmatprep.subr.bf16.mxu0 0
  %1189 = vmatpush1.bf16.msra.mxu0 %v1176
  %1190 = vmatprep.subr.bf16.mxu0 0
  %1191 = vmatpush1.bf16.msra.mxu0 %v1175
  %1192 = vmatprep.subr.bf16.mxu0 0
  %1193 = vmatpush1.bf16.msra.mxu0 %v1174
  %1194 = vmatprep.subr.bf16.mxu0 0
  %1195 = vmatpush1.bf16.msra.mxu0 %v1173
  %1196 = vmatprep.subr.bf16.mxu0 0
  %1197 = vmatpush1.bf16.msra.mxu0 %v1172
  %1198 = vmatprep.subr.bf16.mxu0 0
  %1199 = vmatpush1.bf16.msra.mxu0 %v1171
  %1200 = vmatprep.subr.bf16.mxu0 0
  %1201 = vmatpush1.bf16.msra.mxu0 %v1170
  %1202 = vmatprep.subr.bf16.mxu0 0
  %1203 = vmatpush2.bf16.msra.mxu0 0
  %1204 = vmatprep.subr.bf16.mxu0 0
  %1205 = vmatpush2.bf16.msra.mxu0 0
  %1206 = vmatprep.subr.bf16.mxu0 0
  %1207 = vmatpush2.bf16.msra.mxu0 0
  %1208 = vmatprep.subr.bf16.mxu0 0
  %1209 = vmatpush2.bf16.msra.mxu0 0
  %1210 = vmatprep.subr.bf16.mxu0 0
  %1211 = vmatpush2.bf16.msra.mxu0 0
  %1212 = vmatprep.subr.bf16.mxu0 0
  %1213 = vmatpush2.bf16.msra.mxu0 0
  %1214 = vmatprep.subr.bf16.mxu0 0
  %1215 = vmatpush2.bf16.msra.mxu0 0
  %1216 = vmatprep.subr.bf16.mxu0 0
  %1217 = vmatpush2.bf16.msra.mxu0 0
  %1218 = vmatprep.mubr.bf16.mxu0 0
  %1219 = vmatmul.mubr.bf16.gmra.mxu0 %v1114
  %v1220 = vpop.f32.mrf.mxu0
  %v1221 = vadd.f32 %v1136, %v1220
  %v1222 = vpop.f32.mrf.mxu0
  %v1223 = vpop.f32.mrf.mxu0
  %v1224 = vpop.f32.mrf.mxu0
  %1225 = vdwg.mxu0
  %vm1226 = vcmp.gt.f32.partialorder %v1221, 0.0
  %v1227 = vmul.f32 %v1221, 0.05
  %v1228 = vsel %vm1226, %v1221, %v1227
  %v1229 = vld [vmem:[%s7 + $0x6] sm:$0x1]
  %v1231 = vlaneseq
  %v1232 = vshrl.u32 %v1231, 7
  %v1233 = vsub.s32 0, %v1232
  %v1234 = vrot.slane %v1229, %v1233
  %v1236 = vmul.f32 %v1228, %v1234
  %1237 = vadd.xlane.f32.xlu0 %v1236
  %v1238 = vpop.xlane.xlu0 %1237
  %v1239 = vxor.u32 %v1238, 2147483648
  %v1240 = vmul.f32 %v1239, 1.442695
  %v1241 = vpow.pop %v1240
  %v1242 = vadd.f32 %v1241, 1.0
  %v1243 = vrcp.pop %v1242
  %v1244 = vmul.f32 1.0, %v1243
  %v1245 = vlaneseq
  %v1246 = vshrl.u32 %v1245, 7
  %v1247 = vlaneseq
  %v1248 = vand.u32 %v1247, 127
  %vm1249 = vcmp.eq.s32.totalorder %v1246, %v1248
  %v1250 = vsel %vm1249, %v1244, 0.0
  %vm1251 = vcmask 64512
  %v1252 = vsel %vm1251, %v1250, 0.0
  %v1253 = vrot.slane %v1252, 4
  %v1254 = vadd.f32 %v1252, %v1253
  %v1255 = vrot.slane %v1254, 2
  %v1256 = vadd.f32 %v1254, %v1255
  %v1257 = vrot.slane %v1256, 1
  %v1258 = vadd.f32 %v1256, %v1257
  %vm1259 = vcmask 57344
  %1260 = vst.msk [vmem:[%s8] sm:$0x1] %vm1259, %v1258
  // Predicated region
  $region34: #{binary_classifier_vae_forward.1} parent=0 // pred_check
    _
  $region35: #{binary_classifier_vae_forward.1} parent=0 // pred_check_branch
    %1262 = sbr.rel (0) target = $region37
  $region36: #{binary_classifier_vae_forward.1} parent=0 // pred_region
    _
  $region37: #{binary_classifier_vae_forward.1} parent=0 // pred_fallthru
    _
  // Predicated region
  $region38: #{binary_classifier_vae_forward.1} parent=0 // pred_check
    _
  $region39: #{binary_classifier_vae_forward.1} parent=0 // pred_check_branch
    %1264 = sbr.rel (0) target = $region41
  $region40: #{binary_classifier_vae_forward.1} parent=0 // pred_region
    _
  $region41: #{binary_classifier_vae_forward.1} parent=0 // pred_fallthru
    _

</llo_original>
